<compile_context>
chip_gen: v7x
topology: tpu7x:2x2x1
jax: 0.10.0
libtpu: 0.0.40
codegen_flags: <defaults>
</compile_context>

<pallas_src>
import functools

import jax
import jax.numpy as jnp
from jax.experimental import pallas as pl
from jax.experimental.pallas import tpu as pltpu  # noqa: F401  (TPU-specific tuning hooks)

_LANE = 128  # lane width used for the x slab / padded layer-0 input projection


# ---------------------------------------------------------------------------
# Static slab layout (row offsets are all multiples of 8 -> sublane-aligned slices).
# ---------------------------------------------------------------------------
def _build_layout(hidden, num_layers, batch_pad, kx):
    entries = [("w_ih0", kx), ("w_hh0", hidden)]
    for l in range(1, num_layers):
        entries.append((f"w_cat{l}", 2 * hidden))
        entries.append((f"b{l}", batch_pad))
    entries.append(("fc_w", hidden))
    entries.append(("fc_b", batch_pad))
    layout, off = {}, 0
    for name, rows in entries:
        layout[name] = (off, rows)
        off += rows
    return layout, off


def _reorder_gates(w, hidden):
    """Permute the 4H gate axis from PyTorch [i, f, g, o] to [i, f, o, g]."""
    h = hidden
    return jnp.concatenate(
        [w[..., 0:h], w[..., h:2 * h], w[..., 3 * h:4 * h], w[..., 2 * h:3 * h]], axis=-1)


# ---------------------------------------------------------------------------
# One-time weight packing: one lane-aligned f32 slab of shape (rows, 4H).
# ---------------------------------------------------------------------------
def pack_weights(params, *, batch_pad=8):
    num_layers = len(params["lstm"])
    H = params["lstm"][0]["w_hh"].shape[0]
    D = params["lstm"][0]["w_ih"].shape[0]
    O = params["fc_w"].shape[1]
    G = 4 * H
    KX = _LANE
    assert G % 128 == 0 and H % 8 == 0 and D + 1 <= KX and O <= G and batch_pad % 8 == 0

    layout, total_rows = _build_layout(H, num_layers, batch_pad, KX)
    pieces = {}

    l0 = params["lstm"][0]
    w_ih0 = _reorder_gates(l0["w_ih"], H)               # (D, G)
    b0 = _reorder_gates(l0["b"], H)[0]                   # (G,)  == b_ih + b_hh, permuted
    w_ih0_pad = jnp.zeros((KX, G), jnp.float32)
    w_ih0_pad = w_ih0_pad.at[0:D, :].set(w_ih0)
    w_ih0_pad = w_ih0_pad.at[D, :].set(b0)                # bias row, hit by the ones column of x
    pieces["w_ih0"] = w_ih0_pad
    pieces["w_hh0"] = _reorder_gates(l0["w_hh"], H)       # (H, G)

    for l in range(1, num_layers):
        lp = params["lstm"][l]
        pieces[f"w_cat{l}"] = jnp.concatenate(
            [_reorder_gates(lp["w_ih"], H), _reorder_gates(lp["w_hh"], H)], axis=0)  # (2H, G)
        pieces[f"b{l}"] = jnp.broadcast_to(_reorder_gates(lp["b"], H), (batch_pad, G))

    fc_w_pad = jnp.zeros((H, G), jnp.float32).at[:, 0:O].set(params["fc_w"])
    pieces["fc_w"] = fc_w_pad
    fc_b_pad = jnp.zeros((batch_pad, G), jnp.float32).at[:, 0:O].set(
        jnp.broadcast_to(params["fc_b"], (batch_pad, O)))
    pieces["fc_b"] = fc_b_pad

    slab = jnp.concatenate([pieces[name].astype(jnp.float32) for name in layout], axis=0)
    assert slab.shape == (total_rows, G)
    return slab


# ---------------------------------------------------------------------------
# Fused kernel: all LSTM layers + final fc in one body, fully unrolled over T.
# refs: x_ref (T*BP, KX) f32, w_ref (rows, 4H) f32, out_ref (B, O) f32.
# ---------------------------------------------------------------------------
def _fused_forward_kernel(layout, num_layers, seq_len, batch, batch_pad, hidden, out_dim,
                          x_ref, w_ref, out_ref):
    T, B, BP, H, O = seq_len, batch, batch_pad, hidden, out_dim
    bf16 = jnp.bfloat16

    def wpiece(name, dtype=None):
        off, rows = layout[name]            # static -> sublane-aligned static slice
        v = w_ref[off:off + rows, :]
        return v if dtype is None else v.astype(dtype)

    # One-time loads / bf16 casts of the tiny, fully VMEM-resident weights.
    x_bf = x_ref[...].astype(bf16)                                   # (T*BP, KX)
    w_ih0 = wpiece("w_ih0", bf16)                                    # (KX, 4H), bias folded in
    w_hh0 = wpiece("w_hh0", bf16)                                    # (H, 4H)
    w_cats = [wpiece(f"w_cat{l}", bf16) for l in range(1, num_layers)]   # (2H, 4H)
    b_ls = [wpiece(f"b{l}") for l in range(1, num_layers)]           # (BP, 4H) f32, pre-broadcast
    fc_w = wpiece("fc_w", bf16)                                      # (H, 4H) (lanes >= O are 0)
    fc_b = wpiece("fc_b")                                            # (BP, 4H) f32

    # Hoisted layer-0 input projection, bias included via the constant-1 column of x.
    xp0 = jnp.dot(x_bf, w_ih0, preferred_element_type=jnp.float32)   # (T*BP, 4H)

    def cell(gates, c):
        # gate order is [i, f, o, g]: one whole-vreg sigmoid + one tanh (+ tanh(c)).
        sg = jax.nn.sigmoid(gates)
        g = jnp.tanh(gates[:, 3 * H:4 * H])
        c_new = sg[:, H:2 * H] * c + sg[:, 0:H] * g
        h_new = sg[:, 2 * H:3 * H] * jnp.tanh(c_new)
        return h_new, c_new

    hs = [jnp.zeros((BP, H), jnp.float32) for _ in range(num_layers)]
    cs = [jnp.zeros((BP, H), jnp.float32) for _ in range(num_layers)]

    # Fully unrolled time loop (T is small and static): all state lives in vregs.
    for t in range(T):
        g0 = xp0[t * BP:(t + 1) * BP, :] + jnp.dot(
            hs[0].astype(bf16), w_hh0, preferred_element_type=jnp.float32)
        hs[0], cs[0] = cell(g0, cs[0])
        for l in range(1, num_layers):
            # Fused input+recurrent matmul: [h_{l-1} | h_l] @ [w_ih ; w_hh].
            hcat = jnp.concatenate([hs[l - 1], hs[l]], axis=1).astype(bf16)   # (BP, 2H)
            gl = jnp.dot(hcat, w_cats[l - 1], preferred_element_type=jnp.float32) + b_ls[l - 1]
            hs[l], cs[l] = cell(gl, cs[l])

    # Final Linear on the last timestep's hidden state of the top layer.
    fc = jnp.dot(hs[-1].astype(bf16), fc_w, preferred_element_type=jnp.float32) + fc_b
    out_ref[...] = fc[0:B, 0:O].astype(out_ref.dtype)


# ---------------------------------------------------------------------------
# Forward factory: returns a jitted forward(x, w_slab) for fixed static shapes.
# ---------------------------------------------------------------------------
def make_forward(*, input_size, hidden_size, output_size, num_layers, batch, seq_len,
                 batch_pad=8):
    D, H, O, B, T, BP = input_size, hidden_size, output_size, batch, seq_len, batch_pad
    G = 4 * H
    KX = _LANE
    assert G % 128 == 0 and H % 8 == 0 and D + 1 <= KX and O <= G and B <= BP and BP % 8 == 0

    layout, w_rows = _build_layout(H, num_layers, BP, KX)
    kernel = functools.partial(_fused_forward_kernel, layout, num_layers, T, B, BP, H, O)

    # Advisory cost estimate for the XLA scheduler.
    flops = (2 * (T * BP) * KX * G                       # hoisted layer-0 input projection
             + 2 * T * BP * H * G                        # layer-0 recurrent h @ w_hh
             + 2 * (num_layers - 1) * T * BP * (2 * H) * G   # fused W_cat matmuls
             + 2 * BP * H * G)                           # final fc (padded)
    transcendentals = num_layers * T * BP * (G + 2 * H)
    bytes_accessed = (T * BP * KX + w_rows * G + B * O) * 4

    def full_spec(shape):
        nd = len(shape)
        return pl.BlockSpec(shape, lambda nd=nd: (0,) * nd)

    @jax.jit
    def forward(x, w_slab):
        # x: (B, T, D) batch_first, like the PyTorch module.
        x_t = jnp.transpose(x, (1, 0, 2)).astype(jnp.float32)       # (T, B, D)   time-major
        x_t = jnp.pad(x_t, ((0, 0), (0, BP - B), (0, 0)))            # (T, BP, D)  sublane pad
        ones = jnp.ones((T, BP, 1), jnp.float32)                     # constant-1 column -> bias
        x_slab = jnp.concatenate([x_t, ones], axis=-1)               # (T, BP, D+1)
        x_slab = jnp.pad(x_slab, ((0, 0), (0, 0), (0, KX - (D + 1)))).reshape(T * BP, KX)

        return pl.pallas_call(
            kernel,
            out_shape=jax.ShapeDtypeStruct((B, O), jnp.float32),
            in_specs=[full_spec((T * BP, KX)), full_spec((w_rows, G))],
            out_specs=pl.BlockSpec((B, O), lambda: (0, 0)),
            cost_estimate=pl.CostEstimate(
                flops=flops, transcendentals=transcendentals, bytes_accessed=bytes_accessed),
        )(x_slab, w_slab)

    return forward


# ---------------------------------------------------------------------------
# Deterministic parameter init (same shapes/semantics as nn.LSTM / nn.Linear,
# standard PyTorch gate order [i, f, g, o]; b = b_ih + b_hh).
# ---------------------------------------------------------------------------
def init_params(key, input_size, hidden_size, output_size, num_layers):
    bound = 1.0 / jnp.sqrt(hidden_size)
    layers = []
    for l in range(num_layers):
        d_in = input_size if l == 0 else hidden_size
        key, k1, k2, k3, k4 = jax.random.split(key, 5)
        w_ih = jax.random.uniform(k1, (d_in, 4 * hidden_size), jnp.float32, -bound, bound)
        w_hh = jax.random.uniform(k2, (hidden_size, 4 * hidden_size), jnp.float32, -bound, bound)
        b_ih = jax.random.uniform(k3, (4 * hidden_size,), jnp.float32, -bound, bound)
        b_hh = jax.random.uniform(k4, (4 * hidden_size,), jnp.float32, -bound, bound)
        layers.append({"w_ih": w_ih, "w_hh": w_hh, "b": (b_ih + b_hh)[None, :]})
    key, k5, k6 = jax.random.split(key, 3)
    fb = 1.0 / jnp.sqrt(hidden_size)
    fc_w = jax.random.uniform(k5, (hidden_size, output_size), jnp.float32, -fb, fb)
    fc_b = jax.random.uniform(k6, (output_size,), jnp.float32, -fb, fb)[None, :]
    return {"lstm": layers, "fc_w": fc_w, "fc_b": fc_b}


# ---------------------------------------------------------------------------
# Pure-JAX reference (standard gate order, f32 HIGHEST-precision matmuls).
# ---------------------------------------------------------------------------
def reference_forward(x, params):
    hp = jax.lax.Precision.HIGHEST
    B, T, _ = x.shape
    h_seq = x
    for layer in params["lstm"]:
        H = layer["w_hh"].shape[0]
        h = jnp.zeros((B, H), jnp.float32)
        c = jnp.zeros((B, H), jnp.float32)
        outs = []
        for t in range(T):
            gates = (jnp.dot(h_seq[:, t], layer["w_ih"], precision=hp)
                     + jnp.dot(h, layer["w_hh"], precision=hp) + layer["b"])
            i_g = jax.nn.sigmoid(gates[:, 0 * H:1 * H])
            f_g = jax.nn.sigmoid(gates[:, 1 * H:2 * H])
            g_g = jnp.tanh(gates[:, 2 * H:3 * H])
            o_g = jax.nn.sigmoid(gates[:, 3 * H:4 * H])
            c = f_g * c + i_g * g_g
            h = o_g * jnp.tanh(c)
            outs.append(h)
        h_seq = jnp.stack(outs, axis=1)
    return jnp.dot(h_seq[:, -1], params["fc_w"], precision=hp) + params["fc_b"]


if __name__ == "__main__":
    # Shapes implied by the module: orbit state vector of 6 (pos + vel),
    # seq=8, hidden=32, 2 stacked LSTM layers, output=6.
    B, T = 2, 8
    INPUT_SIZE, HIDDEN_SIZE, OUTPUT_SIZE, NUM_LAYERS = 6, 32, 6, 2

    key = jax.random.PRNGKey(0)
    key, kx, kp = jax.random.split(key, 3)
    x = jax.random.normal(kx, (B, T, INPUT_SIZE), jnp.float32)
    params = init_params(kp, INPUT_SIZE, HIDDEN_SIZE, OUTPUT_SIZE, NUM_LAYERS)

    # One-time weight packing (gate reorder + W_cat fusion + padding) outside the hot path.
    w_slab = jax.block_until_ready(pack_weights(params, batch_pad=8))

    forward = make_forward(input_size=INPUT_SIZE, hidden_size=HIDDEN_SIZE,
                           output_size=OUTPUT_SIZE, num_layers=NUM_LAYERS,
                           batch=B, seq_len=T, batch_pad=8)

    out = jax.block_until_ready(forward(x, w_slab))
    assert out.shape == (B, OUTPUT_SIZE), out.shape

    ref = reference_forward(x, params)
    # Tolerance widened vs. the pure-f32 version because matmul operands are bf16 now.
    assert jnp.allclose(out, ref, atol=2e-2, rtol=2e-2), (out, ref)

    print("KERNEL_OK")
</pallas_src>

<mosaic_0001>
module attributes {stable_mosaic.version = 11 : i64} {
  func.func @_fused_forward_kernel(%arg0: memref<64x128xf32, #tpu.memory_space<vmem>>, %arg1: memref<272x128xf32, #tpu.memory_space<vmem>>, %arg2: memref<2x6xf32, #tpu.memory_space<vmem>>) attributes {dimension_semantics = [], scalar_prefetch = 0 : i64, scratch_operands = 0 : i64, tpu.core_type = #tpu.core_type<tc>} {
    %c0 = arith.constant 0 : index
    %c0_0 = arith.constant 0 : index
    %0 = vector.load %arg0[%c0, %c0_0] : memref<64x128xf32, #tpu.memory_space<vmem>>, vector<64x128xf32>
    %1 = arith.truncf %0 : vector<64x128xf32> to vector<64x128xbf16>
    %c0_1 = arith.constant 0 : index
    %c0_2 = arith.constant 0 : index
    %2 = vector.load %arg1[%c0_1, %c0_2] : memref<272x128xf32, #tpu.memory_space<vmem>>, vector<128x128xf32>
    %3 = arith.truncf %2 : vector<128x128xf32> to vector<128x128xbf16>
    %c128 = arith.constant 128 : index
    %c0_3 = arith.constant 0 : index
    %4 = vector.load %arg1[%c128, %c0_3] : memref<272x128xf32, #tpu.memory_space<vmem>>, vector<32x128xf32>
    %5 = arith.truncf %4 : vector<32x128xf32> to vector<32x128xbf16>
    %c160 = arith.constant 160 : index
    %c0_4 = arith.constant 0 : index
    %6 = vector.load %arg1[%c160, %c0_4] : memref<272x128xf32, #tpu.memory_space<vmem>>, vector<64x128xf32>
    %7 = arith.truncf %6 : vector<64x128xf32> to vector<64x128xbf16>
    %c224 = arith.constant 224 : index
    %c0_5 = arith.constant 0 : index
    %8 = vector.load %arg1[%c224, %c0_5] : memref<272x128xf32, #tpu.memory_space<vmem>>, vector<8x128xf32>
    %c232 = arith.constant 232 : index
    %c0_6 = arith.constant 0 : index
    %9 = vector.load %arg1[%c232, %c0_6] : memref<272x128xf32, #tpu.memory_space<vmem>>, vector<32x128xf32>
    %10 = arith.truncf %9 : vector<32x128xf32> to vector<32x128xbf16>
    %c264 = arith.constant 264 : index
    %c0_7 = arith.constant 0 : index
    %11 = vector.load %arg1[%c264, %c0_7] : memref<272x128xf32, #tpu.memory_space<vmem>>, vector<8x128xf32>
    %cst = arith.constant dense<0.000000e+00> : vector<64x128xf32>
    %12 = tpu.matmul %1, %3, %cst {dimension_numbers = #tpu.dot_dimension_numbers<[1], [0], [0], [1], [0, 0, 1, 1], [], []>} : vector<64x128xbf16>, vector<128x128xbf16>, vector<64x128xf32> -> vector<64x128xf32>
    %cst_8 = arith.constant 0.000000e+00 : f32
    %13 = vector.broadcast %cst_8 : f32 to vector<8x32xf32>
    %cst_9 = arith.constant 0.000000e+00 : f32
    %14 = vector.broadcast %cst_9 : f32 to vector<8x32xf32>
    %cst_10 = arith.constant 0.000000e+00 : f32
    %15 = vector.broadcast %cst_10 : f32 to vector<8x32xf32>
    %cst_11 = arith.constant 0.000000e+00 : f32
    %16 = vector.broadcast %cst_11 : f32 to vector<8x32xf32>
    %17 = vector.extract_strided_slice %12 {offsets = [0, 0], sizes = [8, 128], strides = [1, 1]} : vector<64x128xf32> to vector<8x128xf32>
    %18 = arith.truncf %13 : vector<8x32xf32> to vector<8x32xbf16>
    %cst_12 = arith.constant dense<0.000000e+00> : vector<8x128xf32>
    %19 = tpu.matmul %18, %5, %cst_12 {dimension_numbers = #tpu.dot_dimension_numbers<[1], [0], [0], [1], [0, 0, 1, 1], [], []>} : vector<8x32xbf16>, vector<32x128xbf16>, vector<8x128xf32> -> vector<8x128xf32>
    %20 = arith.addf %17, %19 : vector<8x128xf32>
    %21 = arith.negf %20 : vector<8x128xf32>
    %22 = math.exp %21 : vector<8x128xf32>
    %cst_13 = arith.constant 1.000000e+00 : f32
    %23 = vector.broadcast %cst_13 : f32 to vector<8x128xf32>
    %24 = arith.addf %23, %22 : vector<8x128xf32>
    %25 = arith.divf %23, %24 : vector<8x128xf32>
    %26 = vector.extract_strided_slice %20 {offsets = [0, 96], sizes = [8, 32], strides = [1, 1]} : vector<8x128xf32> to vector<8x32xf32>
    %27 = math.tanh %26 : vector<8x32xf32>
    %28 = vector.extract_strided_slice %25 {offsets = [0, 32], sizes = [8, 32], strides = [1, 1]} : vector<8x128xf32> to vector<8x32xf32>
    %29 = arith.mulf %28, %15 : vector<8x32xf32>
    %30 = vector.extract_strided_slice %25 {offsets = [0, 0], sizes = [8, 32], strides = [1, 1]} : vector<8x128xf32> to vector<8x32xf32>
    %31 = arith.mulf %30, %27 : vector<8x32xf32>
    %32 = arith.addf %29, %31 : vector<8x32xf32>
    %33 = vector.extract_strided_slice %25 {offsets = [0, 64], sizes = [8, 32], strides = [1, 1]} : vector<8x128xf32> to vector<8x32xf32>
    %34 = math.tanh %32 : vector<8x32xf32>
    %35 = arith.mulf %33, %34 : vector<8x32xf32>
    %36 = tpu.concatenate %35, %14 in 1 : vector<8x32xf32>, vector<8x32xf32> -> vector<8x64xf32>
    %37 = arith.truncf %36 : vector<8x64xf32> to vector<8x64xbf16>
    %cst_14 = arith.constant dense<0.000000e+00> : vector<8x128xf32>
    %38 = tpu.matmul %37, %7, %cst_14 {dimension_numbers = #tpu.dot_dimension_numbers<[1], [0], [0], [1], [0, 0, 1, 1], [], []>} : vector<8x64xbf16>, vector<64x128xbf16>, vector<8x128xf32> -> vector<8x128xf32>
    %39 = arith.addf %38, %8 : vector<8x128xf32>
    %40 = arith.negf %39 : vector<8x128xf32>
    %41 = math.exp %40 : vector<8x128xf32>
    %cst_15 = arith.constant 1.000000e+00 : f32
    %42 = vector.broadcast %cst_15 : f32 to vector<8x128xf32>
    %43 = arith.addf %42, %41 : vector<8x128xf32>
    %44 = arith.divf %42, %43 : vector<8x128xf32>
    %45 = vector.extract_strided_slice %39 {offsets = [0, 96], sizes = [8, 32], strides = [1, 1]} : vector<8x128xf32> to vector<8x32xf32>
    %46 = math.tanh %45 : vector<8x32xf32>
    %47 = vector.extract_strided_slice %44 {offsets = [0, 32], sizes = [8, 32], strides = [1, 1]} : vector<8x128xf32> to vector<8x32xf32>
    %48 = arith.mulf %47, %16 : vector<8x32xf32>
    %49 = vector.extract_strided_slice %44 {offsets = [0, 0], sizes = [8, 32], strides = [1, 1]} : vector<8x128xf32> to vector<8x32xf32>
    %50 = arith.mulf %49, %46 : vector<8x32xf32>
    %51 = arith.addf %48, %50 : vector<8x32xf32>
    %52 = vector.extract_strided_slice %44 {offsets = [0, 64], sizes = [8, 32], strides = [1, 1]} : vector<8x128xf32> to vector<8x32xf32>
    %53 = math.tanh %51 : vector<8x32xf32>
    %54 = arith.mulf %52, %53 : vector<8x32xf32>
    %55 = vector.extract_strided_slice %12 {offsets = [8, 0], sizes = [8, 128], strides = [1, 1]} : vector<64x128xf32> to vector<8x128xf32>
    %56 = arith.truncf %35 : vector<8x32xf32> to vector<8x32xbf16>
    %cst_16 = arith.constant dense<0.000000e+00> : vector<8x128xf32>
    %57 = tpu.matmul %56, %5, %cst_16 {dimension_numbers = #tpu.dot_dimension_numbers<[1], [0], [0], [1], [0, 0, 1, 1], [], []>} : vector<8x32xbf16>, vector<32x128xbf16>, vector<8x128xf32> -> vector<8x128xf32>
    %58 = arith.addf %55, %57 : vector<8x128xf32>
    %59 = arith.negf %58 : vector<8x128xf32>
    %60 = math.exp %59 : vector<8x128xf32>
    %cst_17 = arith.constant 1.000000e+00 : f32
    %61 = vector.broadcast %cst_17 : f32 to vector<8x128xf32>
    %62 = arith.addf %61, %60 : vector<8x128xf32>
    %63 = arith.divf %61, %62 : vector<8x128xf32>
    %64 = vector.extract_strided_slice %58 {offsets = [0, 96], sizes = [8, 32], strides = [1, 1]} : vector<8x128xf32> to vector<8x32xf32>
    %65 = math.tanh %64 : vector<8x32xf32>
    %66 = vector.extract_strided_slice %63 {offsets = [0, 32], sizes = [8, 32], strides = [1, 1]} : vector<8x128xf32> to vector<8x32xf32>
    %67 = arith.mulf %66, %32 : vector<8x32xf32>
    %68 = vector.extract_strided_slice %63 {offsets = [0, 0], sizes = [8, 32], strides = [1, 1]} : vector<8x128xf32> to vector<8x32xf32>
    %69 = arith.mulf %68, %65 : vector<8x32xf32>
    %70 = arith.addf %67, %69 : vector<8x32xf32>
    %71 = vector.extract_strided_slice %63 {offsets = [0, 64], sizes = [8, 32], strides = [1, 1]} : vector<8x128xf32> to vector<8x32xf32>
    %72 = math.tanh %70 : vector<8x32xf32>
    %73 = arith.mulf %71, %72 : vector<8x32xf32>
    %74 = tpu.concatenate %73, %54 in 1 : vector<8x32xf32>, vector<8x32xf32> -> vector<8x64xf32>
    %75 = arith.truncf %74 : vector<8x64xf32> to vector<8x64xbf16>
    %cst_18 = arith.constant dense<0.000000e+00> : vector<8x128xf32>
    %76 = tpu.matmul %75, %7, %cst_18 {dimension_numbers = #tpu.dot_dimension_numbers<[1], [0], [0], [1], [0, 0, 1, 1], [], []>} : vector<8x64xbf16>, vector<64x128xbf16>, vector<8x128xf32> -> vector<8x128xf32>
    %77 = arith.addf %76, %8 : vector<8x128xf32>
    %78 = arith.negf %77 : vector<8x128xf32>
    %79 = math.exp %78 : vector<8x128xf32>
    %cst_19 = arith.constant 1.000000e+00 : f32
    %80 = vector.broadcast %cst_19 : f32 to vector<8x128xf32>
    %81 = arith.addf %80, %79 : vector<8x128xf32>
    %82 = arith.divf %80, %81 : vector<8x128xf32>
    %83 = vector.extract_strided_slice %77 {offsets = [0, 96], sizes = [8, 32], strides = [1, 1]} : vector<8x128xf32> to vector<8x32xf32>
    %84 = math.tanh %83 : vector<8x32xf32>
    %85 = vector.extract_strided_slice %82 {offsets = [0, 32], sizes = [8, 32], strides = [1, 1]} : vector<8x128xf32> to vector<8x32xf32>
    %86 = arith.mulf %85, %51 : vector<8x32xf32>
    %87 = vector.extract_strided_slice %82 {offsets = [0, 0], sizes = [8, 32], strides = [1, 1]} : vector<8x128xf32> to vector<8x32xf32>
    %88 = arith.mulf %87, %84 : vector<8x32xf32>
    %89 = arith.addf %86, %88 : vector<8x32xf32>
    %90 = vector.extract_strided_slice %82 {offsets = [0, 64], sizes = [8, 32], strides = [1, 1]} : vector<8x128xf32> to vector<8x32xf32>
    %91 = math.tanh %89 : vector<8x32xf32>
    %92 = arith.mulf %90, %91 : vector<8x32xf32>
    %93 = vector.extract_strided_slice %12 {offsets = [16, 0], sizes = [8, 128], strides = [1, 1]} : vector<64x128xf32> to vector<8x128xf32>
    %94 = arith.truncf %73 : vector<8x32xf32> to vector<8x32xbf16>
    %cst_20 = arith.constant dense<0.000000e+00> : vector<8x128xf32>
    %95 = tpu.matmul %94, %5, %cst_20 {dimension_numbers = #tpu.dot_dimension_numbers<[1], [0], [0], [1], [0, 0, 1, 1], [], []>} : vector<8x32xbf16>, vector<32x128xbf16>, vector<8x128xf32> -> vector<8x128xf32>
    %96 = arith.addf %93, %95 : vector<8x128xf32>
    %97 = arith.negf %96 : vector<8x128xf32>
    %98 = math.exp %97 : vector<8x128xf32>
    %cst_21 = arith.constant 1.000000e+00 : f32
    %99 = vector.broadcast %cst_21 : f32 to vector<8x128xf32>
    %100 = arith.addf %99, %98 : vector<8x128xf32>
    %101 = arith.divf %99, %100 : vector<8x128xf32>
    %102 = vector.extract_strided_slice %96 {offsets = [0, 96], sizes = [8, 32], strides = [1, 1]} : vector<8x128xf32> to vector<8x32xf32>
    %103 = math.tanh %102 : vector<8x32xf32>
    %104 = vector.extract_strided_slice %101 {offsets = [0, 32], sizes = [8, 32], strides = [1, 1]} : vector<8x128xf32> to vector<8x32xf32>
    %105 = arith.mulf %104, %70 : vector<8x32xf32>
    %106 = vector.extract_strided_slice %101 {offsets = [0, 0], sizes = [8, 32], strides = [1, 1]} : vector<8x128xf32> to vector<8x32xf32>
    %107 = arith.mulf %106, %103 : vector<8x32xf32>
    %108 = arith.addf %105, %107 : vector<8x32xf32>
    %109 = vector.extract_strided_slice %101 {offsets = [0, 64], sizes = [8, 32], strides = [1, 1]} : vector<8x128xf32> to vector<8x32xf32>
    %110 = math.tanh %108 : vector<8x32xf32>
    %111 = arith.mulf %109, %110 : vector<8x32xf32>
    %112 = tpu.concatenate %111, %92 in 1 : vector<8x32xf32>, vector<8x32xf32> -> vector<8x64xf32>
    %113 = arith.truncf %112 : vector<8x64xf32> to vector<8x64xbf16>
    %cst_22 = arith.constant dense<0.000000e+00> : vector<8x128xf32>
    %114 = tpu.matmul %113, %7, %cst_22 {dimension_numbers = #tpu.dot_dimension_numbers<[1], [0], [0], [1], [0, 0, 1, 1], [], []>} : vector<8x64xbf16>, vector<64x128xbf16>, vector<8x128xf32> -> vector<8x128xf32>
    %115 = arith.addf %114, %8 : vector<8x128xf32>
    %116 = arith.negf %115 : vector<8x128xf32>
    %117 = math.exp %116 : vector<8x128xf32>
    %cst_23 = arith.constant 1.000000e+00 : f32
    %118 = vector.broadcast %cst_23 : f32 to vector<8x128xf32>
    %119 = arith.addf %118, %117 : vector<8x128xf32>
    %120 = arith.divf %118, %119 : vector<8x128xf32>
    %121 = vector.extract_strided_slice %115 {offsets = [0, 96], sizes = [8, 32], strides = [1, 1]} : vector<8x128xf32> to vector<8x32xf32>
    %122 = math.tanh %121 : vector<8x32xf32>
    %123 = vector.extract_strided_slice %120 {offsets = [0, 32], sizes = [8, 32], strides = [1, 1]} : vector<8x128xf32> to vector<8x32xf32>
    %124 = arith.mulf %123, %89 : vector<8x32xf32>
    %125 = vector.extract_strided_slice %120 {offsets = [0, 0], sizes = [8, 32], strides = [1, 1]} : vector<8x128xf32> to vector<8x32xf32>
    %126 = arith.mulf %125, %122 : vector<8x32xf32>
    %127 = arith.addf %124, %126 : vector<8x32xf32>
    %128 = vector.extract_strided_slice %120 {offsets = [0, 64], sizes = [8, 32], strides = [1, 1]} : vector<8x128xf32> to vector<8x32xf32>
    %129 = math.tanh %127 : vector<8x32xf32>
    %130 = arith.mulf %128, %129 : vector<8x32xf32>
    %131 = vector.extract_strided_slice %12 {offsets = [24, 0], sizes = [8, 128], strides = [1, 1]} : vector<64x128xf32> to vector<8x128xf32>
    %132 = arith.truncf %111 : vector<8x32xf32> to vector<8x32xbf16>
    %cst_24 = arith.constant dense<0.000000e+00> : vector<8x128xf32>
    %133 = tpu.matmul %132, %5, %cst_24 {dimension_numbers = #tpu.dot_dimension_numbers<[1], [0], [0], [1], [0, 0, 1, 1], [], []>} : vector<8x32xbf16>, vector<32x128xbf16>, vector<8x128xf32> -> vector<8x128xf32>
    %134 = arith.addf %131, %133 : vector<8x128xf32>
    %135 = arith.negf %134 : vector<8x128xf32>
    %136 = math.exp %135 : vector<8x128xf32>
    %cst_25 = arith.constant 1.000000e+00 : f32
    %137 = vector.broadcast %cst_25 : f32 to vector<8x128xf32>
    %138 = arith.addf %137, %136 : vector<8x128xf32>
    %139 = arith.divf %137, %138 : vector<8x128xf32>
    %140 = vector.extract_strided_slice %134 {offsets = [0, 96], sizes = [8, 32], strides = [1, 1]} : vector<8x128xf32> to vector<8x32xf32>
    %141 = math.tanh %140 : vector<8x32xf32>
    %142 = vector.extract_strided_slice %139 {offsets = [0, 32], sizes = [8, 32], strides = [1, 1]} : vector<8x128xf32> to vector<8x32xf32>
    %143 = arith.mulf %142, %108 : vector<8x32xf32>
    %144 = vector.extract_strided_slice %139 {offsets = [0, 0], sizes = [8, 32], strides = [1, 1]} : vector<8x128xf32> to vector<8x32xf32>
    %145 = arith.mulf %144, %141 : vector<8x32xf32>
    %146 = arith.addf %143, %145 : vector<8x32xf32>
    %147 = vector.extract_strided_slice %139 {offsets = [0, 64], sizes = [8, 32], strides = [1, 1]} : vector<8x128xf32> to vector<8x32xf32>
    %148 = math.tanh %146 : vector<8x32xf32>
    %149 = arith.mulf %147, %148 : vector<8x32xf32>
    %150 = tpu.concatenate %149, %130 in 1 : vector<8x32xf32>, vector<8x32xf32> -> vector<8x64xf32>
    %151 = arith.truncf %150 : vector<8x64xf32> to vector<8x64xbf16>
    %cst_26 = arith.constant dense<0.000000e+00> : vector<8x128xf32>
    %152 = tpu.matmul %151, %7, %cst_26 {dimension_numbers = #tpu.dot_dimension_numbers<[1], [0], [0], [1], [0, 0, 1, 1], [], []>} : vector<8x64xbf16>, vector<64x128xbf16>, vector<8x128xf32> -> vector<8x128xf32>
    %153 = arith.addf %152, %8 : vector<8x128xf32>
    %154 = arith.negf %153 : vector<8x128xf32>
    %155 = math.exp %154 : vector<8x128xf32>
    %cst_27 = arith.constant 1.000000e+00 : f32
    %156 = vector.broadcast %cst_27 : f32 to vector<8x128xf32>
    %157 = arith.addf %156, %155 : vector<8x128xf32>
    %158 = arith.divf %156, %157 : vector<8x128xf32>
    %159 = vector.extract_strided_slice %153 {offsets = [0, 96], sizes = [8, 32], strides = [1, 1]} : vector<8x128xf32> to vector<8x32xf32>
    %160 = math.tanh %159 : vector<8x32xf32>
    %161 = vector.extract_strided_slice %158 {offsets = [0, 32], sizes = [8, 32], strides = [1, 1]} : vector<8x128xf32> to vector<8x32xf32>
    %162 = arith.mulf %161, %127 : vector<8x32xf32>
    %163 = vector.extract_strided_slice %158 {offsets = [0, 0], sizes = [8, 32], strides = [1, 1]} : vector<8x128xf32> to vector<8x32xf32>
    %164 = arith.mulf %163, %160 : vector<8x32xf32>
    %165 = arith.addf %162, %164 : vector<8x32xf32>
    %166 = vector.extract_strided_slice %158 {offsets = [0, 64], sizes = [8, 32], strides = [1, 1]} : vector<8x128xf32> to vector<8x32xf32>
    %167 = math.tanh %165 : vector<8x32xf32>
    %168 = arith.mulf %166, %167 : vector<8x32xf32>
    %169 = vector.extract_strided_slice %12 {offsets = [32, 0], sizes = [8, 128], strides = [1, 1]} : vector<64x128xf32> to vector<8x128xf32>
    %170 = arith.truncf %149 : vector<8x32xf32> to vector<8x32xbf16>
    %cst_28 = arith.constant dense<0.000000e+00> : vector<8x128xf32>
    %171 = tpu.matmul %170, %5, %cst_28 {dimension_numbers = #tpu.dot_dimension_numbers<[1], [0], [0], [1], [0, 0, 1, 1], [], []>} : vector<8x32xbf16>, vector<32x128xbf16>, vector<8x128xf32> -> vector<8x128xf32>
    %172 = arith.addf %169, %171 : vector<8x128xf32>
    %173 = arith.negf %172 : vector<8x128xf32>
    %174 = math.exp %173 : vector<8x128xf32>
    %cst_29 = arith.constant 1.000000e+00 : f32
    %175 = vector.broadcast %cst_29 : f32 to vector<8x128xf32>
    %176 = arith.addf %175, %174 : vector<8x128xf32>
    %177 = arith.divf %175, %176 : vector<8x128xf32>
    %178 = vector.extract_strided_slice %172 {offsets = [0, 96], sizes = [8, 32], strides = [1, 1]} : vector<8x128xf32> to vector<8x32xf32>
    %179 = math.tanh %178 : vector<8x32xf32>
    %180 = vector.extract_strided_slice %177 {offsets = [0, 32], sizes = [8, 32], strides = [1, 1]} : vector<8x128xf32> to vector<8x32xf32>
    %181 = arith.mulf %180, %146 : vector<8x32xf32>
    %182 = vector.extract_strided_slice %177 {offsets = [0, 0], sizes = [8, 32], strides = [1, 1]} : vector<8x128xf32> to vector<8x32xf32>
    %183 = arith.mulf %182, %179 : vector<8x32xf32>
    %184 = arith.addf %181, %183 : vector<8x32xf32>
    %185 = vector.extract_strided_slice %177 {offsets = [0, 64], sizes = [8, 32], strides = [1, 1]} : vector<8x128xf32> to vector<8x32xf32>
    %186 = math.tanh %184 : vector<8x32xf32>
    %187 = arith.mulf %185, %186 : vector<8x32xf32>
    %188 = tpu.concatenate %187, %168 in 1 : vector<8x32xf32>, vector<8x32xf32> -> vector<8x64xf32>
    %189 = arith.truncf %188 : vector<8x64xf32> to vector<8x64xbf16>
    %cst_30 = arith.constant dense<0.000000e+00> : vector<8x128xf32>
    %190 = tpu.matmul %189, %7, %cst_30 {dimension_numbers = #tpu.dot_dimension_numbers<[1], [0], [0], [1], [0, 0, 1, 1], [], []>} : vector<8x64xbf16>, vector<64x128xbf16>, vector<8x128xf32> -> vector<8x128xf32>
    %191 = arith.addf %190, %8 : vector<8x128xf32>
    %192 = arith.negf %191 : vector<8x128xf32>
    %193 = math.exp %192 : vector<8x128xf32>
    %cst_31 = arith.constant 1.000000e+00 : f32
    %194 = vector.broadcast %cst_31 : f32 to vector<8x128xf32>
    %195 = arith.addf %194, %193 : vector<8x128xf32>
    %196 = arith.divf %194, %195 : vector<8x128xf32>
    %197 = vector.extract_strided_slice %191 {offsets = [0, 96], sizes = [8, 32], strides = [1, 1]} : vector<8x128xf32> to vector<8x32xf32>
    %198 = math.tanh %197 : vector<8x32xf32>
    %199 = vector.extract_strided_slice %196 {offsets = [0, 32], sizes = [8, 32], strides = [1, 1]} : vector<8x128xf32> to vector<8x32xf32>
    %200 = arith.mulf %199, %165 : vector<8x32xf32>
    %201 = vector.extract_strided_slice %196 {offsets = [0, 0], sizes = [8, 32], strides = [1, 1]} : vector<8x128xf32> to vector<8x32xf32>
    %202 = arith.mulf %201, %198 : vector<8x32xf32>
    %203 = arith.addf %200, %202 : vector<8x32xf32>
    %204 = vector.extract_strided_slice %196 {offsets = [0, 64], sizes = [8, 32], strides = [1, 1]} : vector<8x128xf32> to vector<8x32xf32>
    %205 = math.tanh %203 : vector<8x32xf32>
    %206 = arith.mulf %204, %205 : vector<8x32xf32>
    %207 = vector.extract_strided_slice %12 {offsets = [40, 0], sizes = [8, 128], strides = [1, 1]} : vector<64x128xf32> to vector<8x128xf32>
    %208 = arith.truncf %187 : vector<8x32xf32> to vector<8x32xbf16>
    %cst_32 = arith.constant dense<0.000000e+00> : vector<8x128xf32>
    %209 = tpu.matmul %208, %5, %cst_32 {dimension_numbers = #tpu.dot_dimension_numbers<[1], [0], [0], [1], [0, 0, 1, 1], [], []>} : vector<8x32xbf16>, vector<32x128xbf16>, vector<8x128xf32> -> vector<8x128xf32>
    %210 = arith.addf %207, %209 : vector<8x128xf32>
    %211 = arith.negf %210 : vector<8x128xf32>
    %212 = math.exp %211 : vector<8x128xf32>
    %cst_33 = arith.constant 1.000000e+00 : f32
    %213 = vector.broadcast %cst_33 : f32 to vector<8x128xf32>
    %214 = arith.addf %213, %212 : vector<8x128xf32>
    %215 = arith.divf %213, %214 : vector<8x128xf32>
    %216 = vector.extract_strided_slice %210 {offsets = [0, 96], sizes = [8, 32], strides = [1, 1]} : vector<8x128xf32> to vector<8x32xf32>
    %217 = math.tanh %216 : vector<8x32xf32>
    %218 = vector.extract_strided_slice %215 {offsets = [0, 32], sizes = [8, 32], strides = [1, 1]} : vector<8x128xf32> to vector<8x32xf32>
    %219 = arith.mulf %218, %184 : vector<8x32xf32>
    %220 = vector.extract_strided_slice %215 {offsets = [0, 0], sizes = [8, 32], strides = [1, 1]} : vector<8x128xf32> to vector<8x32xf32>
    %221 = arith.mulf %220, %217 : vector<8x32xf32>
    %222 = arith.addf %219, %221 : vector<8x32xf32>
    %223 = vector.extract_strided_slice %215 {offsets = [0, 64], sizes = [8, 32], strides = [1, 1]} : vector<8x128xf32> to vector<8x32xf32>
    %224 = math.tanh %222 : vector<8x32xf32>
    %225 = arith.mulf %223, %224 : vector<8x32xf32>
    %226 = tpu.concatenate %225, %206 in 1 : vector<8x32xf32>, vector<8x32xf32> -> vector<8x64xf32>
    %227 = arith.truncf %226 : vector<8x64xf32> to vector<8x64xbf16>
    %cst_34 = arith.constant dense<0.000000e+00> : vector<8x128xf32>
    %228 = tpu.matmul %227, %7, %cst_34 {dimension_numbers = #tpu.dot_dimension_numbers<[1], [0], [0], [1], [0, 0, 1, 1], [], []>} : vector<8x64xbf16>, vector<64x128xbf16>, vector<8x128xf32> -> vector<8x128xf32>
    %229 = arith.addf %228, %8 : vector<8x128xf32>
    %230 = arith.negf %229 : vector<8x128xf32>
    %231 = math.exp %230 : vector<8x128xf32>
    %cst_35 = arith.constant 1.000000e+00 : f32
    %232 = vector.broadcast %cst_35 : f32 to vector<8x128xf32>
    %233 = arith.addf %232, %231 : vector<8x128xf32>
    %234 = arith.divf %232, %233 : vector<8x128xf32>
    %235 = vector.extract_strided_slice %229 {offsets = [0, 96], sizes = [8, 32], strides = [1, 1]} : vector<8x128xf32> to vector<8x32xf32>
    %236 = math.tanh %235 : vector<8x32xf32>
    %237 = vector.extract_strided_slice %234 {offsets = [0, 32], sizes = [8, 32], strides = [1, 1]} : vector<8x128xf32> to vector<8x32xf32>
    %238 = arith.mulf %237, %203 : vector<8x32xf32>
    %239 = vector.extract_strided_slice %234 {offsets = [0, 0], sizes = [8, 32], strides = [1, 1]} : vector<8x128xf32> to vector<8x32xf32>
    %240 = arith.mulf %239, %236 : vector<8x32xf32>
    %241 = arith.addf %238, %240 : vector<8x32xf32>
    %242 = vector.extract_strided_slice %234 {offsets = [0, 64], sizes = [8, 32], strides = [1, 1]} : vector<8x128xf32> to vector<8x32xf32>
    %243 = math.tanh %241 : vector<8x32xf32>
    %244 = arith.mulf %242, %243 : vector<8x32xf32>
    %245 = vector.extract_strided_slice %12 {offsets = [48, 0], sizes = [8, 128], strides = [1, 1]} : vector<64x128xf32> to vector<8x128xf32>
    %246 = arith.truncf %225 : vector<8x32xf32> to vector<8x32xbf16>
    %cst_36 = arith.constant dense<0.000000e+00> : vector<8x128xf32>
    %247 = tpu.matmul %246, %5, %cst_36 {dimension_numbers = #tpu.dot_dimension_numbers<[1], [0], [0], [1], [0, 0, 1, 1], [], []>} : vector<8x32xbf16>, vector<32x128xbf16>, vector<8x128xf32> -> vector<8x128xf32>
    %248 = arith.addf %245, %247 : vector<8x128xf32>
    %249 = arith.negf %248 : vector<8x128xf32>
    %250 = math.exp %249 : vector<8x128xf32>
    %cst_37 = arith.constant 1.000000e+00 : f32
    %251 = vector.broadcast %cst_37 : f32 to vector<8x128xf32>
    %252 = arith.addf %251, %250 : vector<8x128xf32>
    %253 = arith.divf %251, %252 : vector<8x128xf32>
    %254 = vector.extract_strided_slice %248 {offsets = [0, 96], sizes = [8, 32], strides = [1, 1]} : vector<8x128xf32> to vector<8x32xf32>
    %255 = math.tanh %254 : vector<8x32xf32>
    %256 = vector.extract_strided_slice %253 {offsets = [0, 32], sizes = [8, 32], strides = [1, 1]} : vector<8x128xf32> to vector<8x32xf32>
    %257 = arith.mulf %256, %222 : vector<8x32xf32>
    %258 = vector.extract_strided_slice %253 {offsets = [0, 0], sizes = [8, 32], strides = [1, 1]} : vector<8x128xf32> to vector<8x32xf32>
    %259 = arith.mulf %258, %255 : vector<8x32xf32>
    %260 = arith.addf %257, %259 : vector<8x32xf32>
    %261 = vector.extract_strided_slice %253 {offsets = [0, 64], sizes = [8, 32], strides = [1, 1]} : vector<8x128xf32> to vector<8x32xf32>
    %262 = math.tanh %260 : vector<8x32xf32>
    %263 = arith.mulf %261, %262 : vector<8x32xf32>
    %264 = tpu.concatenate %263, %244 in 1 : vector<8x32xf32>, vector<8x32xf32> -> vector<8x64xf32>
    %265 = arith.truncf %264 : vector<8x64xf32> to vector<8x64xbf16>
    %cst_38 = arith.constant dense<0.000000e+00> : vector<8x128xf32>
    %266 = tpu.matmul %265, %7, %cst_38 {dimension_numbers = #tpu.dot_dimension_numbers<[1], [0], [0], [1], [0, 0, 1, 1], [], []>} : vector<8x64xbf16>, vector<64x128xbf16>, vector<8x128xf32> -> vector<8x128xf32>
    %267 = arith.addf %266, %8 : vector<8x128xf32>
    %268 = arith.negf %267 : vector<8x128xf32>
    %269 = math.exp %268 : vector<8x128xf32>
    %cst_39 = arith.constant 1.000000e+00 : f32
    %270 = vector.broadcast %cst_39 : f32 to vector<8x128xf32>
    %271 = arith.addf %270, %269 : vector<8x128xf32>
    %272 = arith.divf %270, %271 : vector<8x128xf32>
    %273 = vector.extract_strided_slice %267 {offsets = [0, 96], sizes = [8, 32], strides = [1, 1]} : vector<8x128xf32> to vector<8x32xf32>
    %274 = math.tanh %273 : vector<8x32xf32>
    %275 = vector.extract_strided_slice %272 {offsets = [0, 32], sizes = [8, 32], strides = [1, 1]} : vector<8x128xf32> to vector<8x32xf32>
    %276 = arith.mulf %275, %241 : vector<8x32xf32>
    %277 = vector.extract_strided_slice %272 {offsets = [0, 0], sizes = [8, 32], strides = [1, 1]} : vector<8x128xf32> to vector<8x32xf32>
    %278 = arith.mulf %277, %274 : vector<8x32xf32>
    %279 = arith.addf %276, %278 : vector<8x32xf32>
    %280 = vector.extract_strided_slice %272 {offsets = [0, 64], sizes = [8, 32], strides = [1, 1]} : vector<8x128xf32> to vector<8x32xf32>
    %281 = math.tanh %279 : vector<8x32xf32>
    %282 = arith.mulf %280, %281 : vector<8x32xf32>
    %283 = vector.extract_strided_slice %12 {offsets = [56, 0], sizes = [8, 128], strides = [1, 1]} : vector<64x128xf32> to vector<8x128xf32>
    %284 = arith.truncf %263 : vector<8x32xf32> to vector<8x32xbf16>
    %cst_40 = arith.constant dense<0.000000e+00> : vector<8x128xf32>
    %285 = tpu.matmul %284, %5, %cst_40 {dimension_numbers = #tpu.dot_dimension_numbers<[1], [0], [0], [1], [0, 0, 1, 1], [], []>} : vector<8x32xbf16>, vector<32x128xbf16>, vector<8x128xf32> -> vector<8x128xf32>
    %286 = arith.addf %283, %285 : vector<8x128xf32>
    %287 = arith.negf %286 : vector<8x128xf32>
    %288 = math.exp %287 : vector<8x128xf32>
    %cst_41 = arith.constant 1.000000e+00 : f32
    %289 = vector.broadcast %cst_41 : f32 to vector<8x128xf32>
    %290 = arith.addf %289, %288 : vector<8x128xf32>
    %291 = arith.divf %289, %290 : vector<8x128xf32>
    %292 = vector.extract_strided_slice %286 {offsets = [0, 96], sizes = [8, 32], strides = [1, 1]} : vector<8x128xf32> to vector<8x32xf32>
    %293 = math.tanh %292 : vector<8x32xf32>
    %294 = vector.extract_strided_slice %291 {offsets = [0, 32], sizes = [8, 32], strides = [1, 1]} : vector<8x128xf32> to vector<8x32xf32>
    %295 = arith.mulf %294, %260 : vector<8x32xf32>
    %296 = vector.extract_strided_slice %291 {offsets = [0, 0], sizes = [8, 32], strides = [1, 1]} : vector<8x128xf32> to vector<8x32xf32>
    %297 = arith.mulf %296, %293 : vector<8x32xf32>
    %298 = arith.addf %295, %297 : vector<8x32xf32>
    %299 = vector.extract_strided_slice %291 {offsets = [0, 64], sizes = [8, 32], strides = [1, 1]} : vector<8x128xf32> to vector<8x32xf32>
    %300 = math.tanh %298 : vector<8x32xf32>
    %301 = arith.mulf %299, %300 : vector<8x32xf32>
    %302 = tpu.concatenate %301, %282 in 1 : vector<8x32xf32>, vector<8x32xf32> -> vector<8x64xf32>
    %303 = arith.truncf %302 : vector<8x64xf32> to vector<8x64xbf16>
    %cst_42 = arith.constant dense<0.000000e+00> : vector<8x128xf32>
    %304 = tpu.matmul %303, %7, %cst_42 {dimension_numbers = #tpu.dot_dimension_numbers<[1], [0], [0], [1], [0, 0, 1, 1], [], []>} : vector<8x64xbf16>, vector<64x128xbf16>, vector<8x128xf32> -> vector<8x128xf32>
    %305 = arith.addf %304, %8 : vector<8x128xf32>
    %306 = arith.negf %305 : vector<8x128xf32>
    %307 = math.exp %306 : vector<8x128xf32>
    %cst_43 = arith.constant 1.000000e+00 : f32
    %308 = vector.broadcast %cst_43 : f32 to vector<8x128xf32>
    %309 = arith.addf %308, %307 : vector<8x128xf32>
    %310 = arith.divf %308, %309 : vector<8x128xf32>
    %311 = vector.extract_strided_slice %305 {offsets = [0, 96], sizes = [8, 32], strides = [1, 1]} : vector<8x128xf32> to vector<8x32xf32>
    %312 = math.tanh %311 : vector<8x32xf32>
    %313 = vector.extract_strided_slice %310 {offsets = [0, 32], sizes = [8, 32], strides = [1, 1]} : vector<8x128xf32> to vector<8x32xf32>
    %314 = arith.mulf %313, %279 : vector<8x32xf32>
    %315 = vector.extract_strided_slice %310 {offsets = [0, 0], sizes = [8, 32], strides = [1, 1]} : vector<8x128xf32> to vector<8x32xf32>
    %316 = arith.mulf %315, %312 : vector<8x32xf32>
    %317 = arith.addf %314, %316 : vector<8x32xf32>
    %318 = vector.extract_strided_slice %310 {offsets = [0, 64], sizes = [8, 32], strides = [1, 1]} : vector<8x128xf32> to vector<8x32xf32>
    %319 = math.tanh %317 : vector<8x32xf32>
    %320 = arith.mulf %318, %319 : vector<8x32xf32>
    %321 = arith.truncf %320 : vector<8x32xf32> to vector<8x32xbf16>
    %cst_44 = arith.constant dense<0.000000e+00> : vector<8x128xf32>
    %322 = tpu.matmul %321, %10, %cst_44 {dimension_numbers = #tpu.dot_dimension_numbers<[1], [0], [0], [1], [0, 0, 1, 1], [], []>} : vector<8x32xbf16>, vector<32x128xbf16>, vector<8x128xf32> -> vector<8x128xf32>
    %323 = arith.addf %322, %11 : vector<8x128xf32>
    %324 = vector.extract_strided_slice %323 {offsets = [0, 0], sizes = [2, 6], strides = [1, 1]} : vector<8x128xf32> to vector<2x6xf32>
    %c0_45 = arith.constant 0 : index
    %c0_46 = arith.constant 0 : index
    %325 = vector.load %arg2[%c0_45, %c0_46] : memref<2x6xf32, #tpu.memory_space<vmem>>, vector<2x6xf32>
    tpu.vector_store %arg2[%c0_45, %c0_46], %324 {strides = array<i32>} : memref<2x6xf32, #tpu.memory_space<vmem>>, vector<2x6xf32>,
    return
  }
}

</mosaic_0001>

<llo_original>
// kernel: forward.1
$region0: #{forward.1}
  #allocation0 [shape = 'u32[]', space=smem, size = 0x4, offset = 0x4, fixed_abs, tag = 'smem constant byte address 0x4 - core index']
  #allocation1 [shape = 'u32[144,128]{1,0:T(1,128)}', space=vmem, size = 0x12000, scoped, tag = 'internal scratch']
  %s0 = inlined_call_operand.vmem [shape: f32[64,128], index: 0, kind: input, shape index: {}]
  %s1 = inlined_call_operand.hbm [shape: f32[272,128], index: 1, kind: input, shape index: {}]
  %s2 = inlined_call_operand.hbm [shape: f32[2,6], index: 2, kind: output, shape index: {}]
  %s3 = sld [smem:[#allocation0]]
  $region22: #{forward.1} parent=0
    _
  %s5 = ssub.s32 1, %s3
  %s6 = scalar_select 0, %s5, %s3
  $region1: #{forward.1} parent=0
    #allocation2 [shape = 'u8[139264]{0}', space=vmem, size = 0x22000, scoped, tag = 'input window, operand 1, single buffered']
    #allocation3 [shape = 's32[1]{0}', space=sflag, size = 0x4, scoped, tag = 'scoped memory for forward.1']
    #allocation4 [shape = 's32[1]{0}', space=sflag, size = 0x4, scoped, tag = 'scoped memory for forward.1']
    #allocation5 [shape = 'u8[1024]{0}', space=vmem, size = 0x400, scoped, tag = 'output window, operand 0, single buffered']
    %7 = vsyncpa [#allocation3], 0
    %8 = vsyncpa [#allocation4], 0
    // Predicated region
    $region2: #{forward.1} parent=1 // pred_check
      _
    $region3: #{forward.1} parent=1 // pred_check_branch
      %10 = sbr.rel (0) target = $region5
    $region4: #{forward.1} parent=1 // pred_region
      _
    $region5: #{forward.1} parent=1 // pred_fallthru
      _
    // Predicated region
    $region6: #{forward.1} parent=1 // pred_check
      _
    $region7: #{forward.1} parent=1 // pred_check_branch
      %12 = sbr.rel (0) target = $region9
    $region8: #{forward.1} parent=1 // pred_region
      %s14 = ssub.s32 4352, 4352
      %15 = vsyncadd [#allocation3], %s14
      %s16 = sshll.u32 [#allocation2], 4
      %s17 = int_to_ptr.vmem [resolvable:$true] %s16
      %22 = dma.hbm_to_vmem [thread:$0]  %s1, 4352, %s17, [#allocation3], 128, 128, 8
    $region9: #{forward.1} parent=1 // pred_fallthru
      _
    // Predicated region
    $region10: #{forward.1} parent=1 // pred_check
      _
    $region11: #{forward.1} parent=1 // pred_check_branch
      %24 = sbr.rel (0) target = $region13
    $region12: #{forward.1} parent=1 // pred_region
      %25 = dma.done [#allocation3], 4352
    $region13: #{forward.1} parent=1 // pred_fallthru
      _
    %v27 = vld [vmem:[%s0] sm:$0xff]
    %v28 = vld [vmem:[%s0 + $0x8] sm:$0xff]
    %v29 = vld [vmem:[%s0 + $0x10] sm:$0xff]
    %v30 = vld [vmem:[%s0 + $0x18] sm:$0xff]
    %v31 = vld [vmem:[%s0 + $0x20] sm:$0xff]
    %v32 = vld [vmem:[%s0 + $0x28] sm:$0xff]
    %v33 = vld [vmem:[%s0 + $0x30] sm:$0xff]
    %v34 = vld [vmem:[%s0 + $0x38] sm:$0xff]
    %v35 = vpack.c.bf16 %v28, %v27
    %v36 = vpack.c.bf16 %v30, %v29
    %v37 = vpack.c.bf16 %v32, %v31
    %v38 = vpack.c.bf16 %v34, %v33
    %v39 = vld [vmem:[#allocation2] sm:$0xff]
    %v40 = vld [vmem:[#allocation2 + $0x8] sm:$0xff]
    %v41 = vld [vmem:[#allocation2 + $0x10] sm:$0xff]
    %v42 = vld [vmem:[#allocation2 + $0x18] sm:$0xff]
    %v43 = vld [vmem:[#allocation2 + $0x20] sm:$0xff]
    %v44 = vld [vmem:[#allocation2 + $0x28] sm:$0xff]
    %v45 = vld [vmem:[#allocation2 + $0x30] sm:$0xff]
    %v46 = vld [vmem:[#allocation2 + $0x38] sm:$0xff]
    %v47 = vld [vmem:[#allocation2 + $0x40] sm:$0xff]
    %v48 = vld [vmem:[#allocation2 + $0x48] sm:$0xff]
    %v49 = vld [vmem:[#allocation2 + $0x50] sm:$0xff]
    %v50 = vld [vmem:[#allocation2 + $0x58] sm:$0xff]
    %v51 = vld [vmem:[#allocation2 + $0x60] sm:$0xff]
    %v52 = vld [vmem:[#allocation2 + $0x68] sm:$0xff]
    %v53 = vld [vmem:[#allocation2 + $0x70] sm:$0xff]
    %v54 = vld [vmem:[#allocation2 + $0x78] sm:$0xff]
    %v55 = vpack.c.bf16 %v40, %v39
    %v56 = vpack.c.bf16 %v42, %v41
    %v57 = vpack.c.bf16 %v44, %v43
    %v58 = vpack.c.bf16 %v46, %v45
    %v59 = vpack.c.bf16 %v48, %v47
    %v60 = vpack.c.bf16 %v50, %v49
    %v61 = vpack.c.bf16 %v52, %v51
    %v62 = vpack.c.bf16 %v54, %v53
    %v63 = vld [vmem:[#allocation2 + $0x80] sm:$0xff]
    %v64 = vld [vmem:[#allocation2 + $0x88] sm:$0xff]
    %v65 = vld [vmem:[#allocation2 + $0x90] sm:$0xff]
    %v66 = vld [vmem:[#allocation2 + $0x98] sm:$0xff]
    %v67 = vpack.c.bf16 %v64, %v63
    %v68 = vpack.c.bf16 %v66, %v65
    %v69 = vld [vmem:[#allocation2 + $0xa0] sm:$0xff]
    %v70 = vld [vmem:[#allocation2 + $0xa8] sm:$0xff]
    %v71 = vld [vmem:[#allocation2 + $0xb0] sm:$0xff]
    %v72 = vld [vmem:[#allocation2 + $0xb8] sm:$0xff]
    %v73 = vld [vmem:[#allocation2 + $0xc0] sm:$0xff]
    %v74 = vld [vmem:[#allocation2 + $0xc8] sm:$0xff]
    %v75 = vld [vmem:[#allocation2 + $0xd0] sm:$0xff]
    %v76 = vld [vmem:[#allocation2 + $0xd8] sm:$0xff]
    %v77 = vpack.c.bf16 %v70, %v69
    %v78 = vpack.c.bf16 %v72, %v71
    %v79 = vpack.c.bf16 %v74, %v73
    %v80 = vpack.c.bf16 %v76, %v75
    %v81 = vld [vmem:[#allocation2 + $0xe0] sm:$0xff]
    %v82 = vld [vmem:[#allocation2 + $0xe8] sm:$0xff]
    %v83 = vld [vmem:[#allocation2 + $0xf0] sm:$0xff]
    %v84 = vld [vmem:[#allocation2 + $0xf8] sm:$0xff]
    %v85 = vld [vmem:[#allocation2 + $0x100] sm:$0xff]
    %v86 = vpack.c.bf16 %v83, %v82
    %v87 = vpack.c.bf16 %v85, %v84
    %v88 = vld [vmem:[#allocation2 + $0x108] sm:$0xff]
    %89 = vmatprep.subr.bf16.mxu0 0
    %90 = vmatpush1.bf16.msra.mxu0 %v55
    %91 = vmatprep.subr.bf16.mxu0 0
    %92 = vmatpush1.bf16.msra.mxu0 %v56
    %93 = vmatprep.subr.bf16.mxu0 0
    %94 = vmatpush1.bf16.msra.mxu0 %v57
    %95 = vmatprep.subr.bf16.mxu0 0
    %96 = vmatpush1.bf16.msra.mxu0 %v58
    %97 = vmatprep.subr.bf16.mxu0 0
    %98 = vmatpush1.bf16.msra.mxu0 %v59
    %99 = vmatprep.subr.bf16.mxu0 0
    %100 = vmatpush1.bf16.msra.mxu0 %v60
    %101 = vmatprep.subr.bf16.mxu0 0
    %102 = vmatpush1.bf16.msra.mxu0 %v61
    %103 = vmatprep.subr.bf16.mxu0 0
    %104 = vmatpush1.bf16.msra.mxu0 %v62
    %105 = vmatprep.subr.bf16.mxu0 0
    %106 = vmatpush1.bf16.msra.mxu0 0
    %107 = vmatprep.subr.bf16.mxu0 0
    %108 = vmatpush1.bf16.msra.mxu0 0
    %109 = vmatprep.subr.bf16.mxu0 0
    %110 = vmatpush1.bf16.msra.mxu0 0
    %111 = vmatprep.subr.bf16.mxu0 0
    %112 = vmatpush1.bf16.msra.mxu0 0
    %113 = vmatprep.subr.bf16.mxu0 0
    %114 = vmatpush1.bf16.msra.mxu0 0
    %115 = vmatprep.subr.bf16.mxu0 0
    %116 = vmatpush1.bf16.msra.mxu0 0
    %117 = vmatprep.subr.bf16.mxu0 0
    %118 = vmatpush1.bf16.msra.mxu0 0
    %119 = vmatprep.subr.bf16.mxu0 0
    %120 = vmatpush1.bf16.msra.mxu0 0
    %121 = vmatprep.mubr.bf16.mxu0 0
    %122 = vmatmul.mubr.bf16.gmra.mrb[0].mxu0 %v35
    %v123 = vpop.f32.mrb[0].mxu0
    %v124 = vadd.f32 0.0, %v123
    %v125 = vpop.f32.mrb[0].mxu0
    %v126 = vpop.f32.mrb[0].mxu0
    %v127 = vadd.f32 0.0, %v126
    %v128 = vpop.f32.mrb[0].mxu0
    %129 = vmatprep.mubr.bf16.mxu0 0
    %130 = vmatmul.mubr.bf16.gmra.mrb[0].mxu0 %v36
    %v131 = vpop.f32.mrb[0].mxu0
    %v132 = vadd.f32 0.0, %v131
    %v133 = vpop.f32.mrb[0].mxu0
    %v134 = vpop.f32.mrb[0].mxu0
    %v135 = vadd.f32 0.0, %v134
    %v136 = vpop.f32.mrb[0].mxu0
    %137 = vmatprep.mubr.bf16.mxu0 0
    %138 = vmatmul.mubr.bf16.gmra.mrb[0].mxu0 %v37
    %v139 = vpop.f32.mrb[0].mxu0
    %v140 = vadd.f32 0.0, %v139
    %v141 = vpop.f32.mrb[0].mxu0
    %v142 = vpop.f32.mrb[0].mxu0
    %v143 = vadd.f32 0.0, %v142
    %v144 = vpop.f32.mrb[0].mxu0
    %145 = vmatprep.mubr.bf16.mxu0 0
    %146 = vmatmul.mubr.bf16.gmra.mrb[0].mxu0 %v38
    %v147 = vpop.f32.mrb[0].mxu0
    %v148 = vadd.f32 0.0, %v147
    %v149 = vpop.f32.mrb[0].mxu0
    %v150 = vpop.f32.mrb[0].mxu0
    %v151 = vadd.f32 0.0, %v150
    %v152 = vpop.f32.mrb[0].mxu0
    %153 = vdwg.mxu0
    %vm154 = vcmask 261120
    %v156 = vsel %vm154, 0, 0
    %158 = vmatprep.subr.bf16.mxu0 0
    %159 = vmatpush1.bf16.msra.mxu0 %v67
    %160 = vmatprep.subr.bf16.mxu0 0
    %161 = vmatpush1.bf16.msra.mxu0 %v68
    %162 = vmatprep.subr.bf16.mxu0 0
    %163 = vmatpush1.bf16.msra.mxu0 0
    %164 = vmatprep.subr.bf16.mxu0 0
    %165 = vmatpush1.bf16.msra.mxu0 0
    %166 = vmatprep.subr.bf16.mxu0 0
    %167 = vmatpush1.bf16.msra.mxu0 0
    %168 = vmatprep.subr.bf16.mxu0 0
    %169 = vmatpush1.bf16.msra.mxu0 0
    %170 = vmatprep.subr.bf16.mxu0 0
    %171 = vmatpush1.bf16.msra.mxu0 0
    %172 = vmatprep.subr.bf16.mxu0 0
    %173 = vmatpush1.bf16.msra.mxu0 0
    %174 = vmatprep.subr.bf16.mxu0 0
    %175 = vmatpush1.bf16.msra.mxu0 0
    %176 = vmatprep.subr.bf16.mxu0 0
    %177 = vmatpush1.bf16.msra.mxu0 0
    %178 = vmatprep.subr.bf16.mxu0 0
    %179 = vmatpush1.bf16.msra.mxu0 0
    %180 = vmatprep.subr.bf16.mxu0 0
    %181 = vmatpush1.bf16.msra.mxu0 0
    %182 = vmatprep.subr.bf16.mxu0 0
    %183 = vmatpush1.bf16.msra.mxu0 0
    %184 = vmatprep.subr.bf16.mxu0 0
    %185 = vmatpush1.bf16.msra.mxu0 0
    %186 = vmatprep.subr.bf16.mxu0 0
    %187 = vmatpush1.bf16.msra.mxu0 0
    %188 = vmatprep.subr.bf16.mxu0 0
    %189 = vmatpush1.bf16.msra.mxu0 0
    %190 = vmatprep.mubr.bf16.mxu0 0
    %191 = vmatmul.mubr.bf16.gmra.mrb[0].mxu0 %v156
    %v192 = vpop.f32.mrb[0].mxu0
    %v193 = vadd.f32 0.0, %v192
    %v194 = vpop.f32.mrb[0].mxu0
    %v195 = vpop.f32.mrb[0].mxu0
    %v196 = vpop.f32.mrb[0].mxu0
    %197 = vdwg.mxu0
    %v198 = vadd.f32 %v124, %v193
    %v199 = vxor.u32 %v198, 2147483648
    %v200 = vmul.f32 %v199, 1.442695
    %v201 = vpow.pop %v200
    %v202 = vadd.f32 %v201, 1.0
    %v203 = vrcp.pop %v202
    %v204 = vmul.f32 1.0, %v203
    %v205 = vtanh.pop %v198
    %v206 = vmul.f32 %v204, 0.0
    %208 = vrot.lane.b32.xlu0 %v205, 32
    %v209 = vpop.permute.xlu0 %208
    %v211 = vmul.f32 %v204, %v209
    %213 = vrot.lane.b32.xlu0 %v211, 32
    %v214 = vpop.permute.xlu0 %213
    %v216 = vadd.f32 %v206, %v214
    %v217 = vtanh.pop %v216
    %219 = vrot.lane.b32.xlu0 %v217, 32
    %v220 = vpop.permute.xlu0 %219
    %v222 = vmul.f32 %v204, %v220
    %224 = vrot.lane.b32.xlu0 %v222, 64
    %v225 = vpop.permute.xlu0 %224
    %v227 = vsel %vm154, %v225, 0.0
    %v228 = vpack.c.bf16 %v227, %v227
    %vm229 = vcmask 523264
    %v231 = vsel %vm229, %v228, 0
    %233 = vmatprep.subr.bf16.mxu0 0
    %234 = vmatpush1.bf16.msra.mxu0 %v77
    %235 = vmatprep.subr.bf16.mxu0 0
    %236 = vmatpush1.bf16.msra.mxu0 %v78
    %237 = vmatprep.subr.bf16.mxu0 0
    %238 = vmatpush1.bf16.msra.mxu0 %v79
    %239 = vmatprep.subr.bf16.mxu0 0
    %240 = vmatpush1.bf16.msra.mxu0 %v80
    %241 = vmatprep.subr.bf16.mxu0 0
    %242 = vmatpush1.bf16.msra.mxu0 0
    %243 = vmatprep.subr.bf16.mxu0 0
    %244 = vmatpush1.bf16.msra.mxu0 0
    %245 = vmatprep.subr.bf16.mxu0 0
    %246 = vmatpush1.bf16.msra.mxu0 0
    %247 = vmatprep.subr.bf16.mxu0 0
    %248 = vmatpush1.bf16.msra.mxu0 0
    %249 = vmatprep.subr.bf16.mxu0 0
    %250 = vmatpush1.bf16.msra.mxu0 0
    %251 = vmatprep.subr.bf16.mxu0 0
    %252 = vmatpush1.bf16.msra.mxu0 0
    %253 = vmatprep.subr.bf16.mxu0 0
    %254 = vmatpush1.bf16.msra.mxu0 0
    %255 = vmatprep.subr.bf16.mxu0 0
    %256 = vmatpush1.bf16.msra.mxu0 0
    %257 = vmatprep.subr.bf16.mxu0 0
    %258 = vmatpush1.bf16.msra.mxu0 0
    %259 = vmatprep.subr.bf16.mxu0 0
    %260 = vmatpush1.bf16.msra.mxu0 0
    %261 = vmatprep.subr.bf16.mxu0 0
    %262 = vmatpush1.bf16.msra.mxu0 0
    %263 = vmatprep.subr.bf16.mxu0 0
    %264 = vmatpush1.bf16.msra.mxu0 0
    %265 = vmatprep.mubr.bf16.mxu0 0
    %266 = vmatmul.mubr.bf16.gmra.mrb[0].mxu0 %v231
    %v267 = vpop.f32.mrb[0].mxu0
    %v268 = vadd.f32 %v81, %v267
    %v269 = vpop.f32.mrb[0].mxu0
    %v270 = vpop.f32.mrb[0].mxu0
    %v271 = vpop.f32.mrb[0].mxu0
    %272 = vdwg.mxu0
    %v273 = vxor.u32 %v268, 2147483648
    %v274 = vmul.f32 %v273, 1.442695
    %v275 = vpow.pop %v274
    %v276 = vadd.f32 %v275, 1.0
    %v277 = vrcp.pop %v276
    %v278 = vmul.f32 1.0, %v277
    %v279 = vtanh.pop %v268
    %v280 = vmul.f32 %v278, 0.0
    %282 = vrot.lane.b32.xlu0 %v279, 32
    %v283 = vpop.permute.xlu0 %282
    %v285 = vmul.f32 %v278, %v283
    %287 = vrot.lane.b32.xlu0 %v285, 32
    %v288 = vpop.permute.xlu0 %287
    %v290 = vadd.f32 %v280, %v288
    %v291 = vtanh.pop %v290
    %293 = vrot.lane.b32.xlu0 %v291, 32
    %v294 = vpop.permute.xlu0 %293
    %v296 = vmul.f32 %v278, %v294
    %v297 = vpack.c.bf16 %v222, %v222
    %299 = vrot.lane.b32.xlu0 %v297, 64
    %v300 = vpop.permute.xlu0 %299
    %v302 = vsel %vm154, %v300, 0
    %304 = vmatprep.subr.bf16.mxu0 0
    %305 = vmatpush1.bf16.msra.mxu0 %v67
    %306 = vmatprep.subr.bf16.mxu0 0
    %307 = vmatpush1.bf16.msra.mxu0 %v68
    %308 = vmatprep.subr.bf16.mxu0 0
    %309 = vmatpush1.bf16.msra.mxu0 0
    %310 = vmatprep.subr.bf16.mxu0 0
    %311 = vmatpush1.bf16.msra.mxu0 0
    %312 = vmatprep.subr.bf16.mxu0 0
    %313 = vmatpush1.bf16.msra.mxu0 0
    %314 = vmatprep.subr.bf16.mxu0 0
    %315 = vmatpush1.bf16.msra.mxu0 0
    %316 = vmatprep.subr.bf16.mxu0 0
    %317 = vmatpush1.bf16.msra.mxu0 0
    %318 = vmatprep.subr.bf16.mxu0 0
    %319 = vmatpush1.bf16.msra.mxu0 0
    %320 = vmatprep.subr.bf16.mxu0 0
    %321 = vmatpush1.bf16.msra.mxu0 0
    %322 = vmatprep.subr.bf16.mxu0 0
    %323 = vmatpush1.bf16.msra.mxu0 0
    %324 = vmatprep.subr.bf16.mxu0 0
    %325 = vmatpush1.bf16.msra.mxu0 0
    %326 = vmatprep.subr.bf16.mxu0 0
    %327 = vmatpush1.bf16.msra.mxu0 0
    %328 = vmatprep.subr.bf16.mxu0 0
    %329 = vmatpush1.bf16.msra.mxu0 0
    %330 = vmatprep.subr.bf16.mxu0 0
    %331 = vmatpush1.bf16.msra.mxu0 0
    %332 = vmatprep.subr.bf16.mxu0 0
    %333 = vmatpush1.bf16.msra.mxu0 0
    %334 = vmatprep.subr.bf16.mxu0 0
    %335 = vmatpush1.bf16.msra.mxu0 0
    %336 = vmatprep.mubr.bf16.mxu0 0
    %337 = vmatmul.mubr.bf16.gmra.mrb[0].mxu0 %v302
    %v338 = vpop.f32.mrb[0].mxu0
    %v339 = vadd.f32 0.0, %v338
    %v340 = vpop.f32.mrb[0].mxu0
    %v341 = vpop.f32.mrb[0].mxu0
    %v342 = vpop.f32.mrb[0].mxu0
    %343 = vdwg.mxu0
    %v344 = vadd.f32 %v127, %v339
    %v345 = vxor.u32 %v344, 2147483648
    %v346 = vmul.f32 %v345, 1.442695
    %v347 = vpow.pop %v346
    %v348 = vadd.f32 %v347, 1.0
    %v349 = vrcp.pop %v348
    %v350 = vmul.f32 1.0, %v349
    %v351 = vtanh.pop %v344
    %v352 = vmul.f32 %v350, %v216
    %354 = vrot.lane.b32.xlu0 %v351, 32
    %v355 = vpop.permute.xlu0 %354
    %v357 = vmul.f32 %v350, %v355
    %359 = vrot.lane.b32.xlu0 %v357, 32
    %v360 = vpop.permute.xlu0 %359
    %v362 = vadd.f32 %v352, %v360
    %v363 = vtanh.pop %v362
    %365 = vrot.lane.b32.xlu0 %v363, 32
    %v366 = vpop.permute.xlu0 %365
    %v368 = vmul.f32 %v350, %v366
    %370 = vrot.lane.b32.xlu0 %v368, 64
    %v371 = vpop.permute.xlu0 %370
    %374 = vrot.lane.b32.xlu0 %v296, 96
    %v375 = vpop.permute.xlu0 %374
    %v377 = vsel %vm154, %v371, %v375
    %v378 = vpack.c.bf16 %v377, %v377
    %v380 = vsel %vm229, %v378, 0
    %382 = vmatprep.subr.bf16.mxu0 0
    %383 = vmatpush1.bf16.msra.mxu0 %v77
    %384 = vmatprep.subr.bf16.mxu0 0
    %385 = vmatpush1.bf16.msra.mxu0 %v78
    %386 = vmatprep.subr.bf16.mxu0 0
    %387 = vmatpush1.bf16.msra.mxu0 %v79
    %388 = vmatprep.subr.bf16.mxu0 0
    %389 = vmatpush1.bf16.msra.mxu0 %v80
    %390 = vmatprep.subr.bf16.mxu0 0
    %391 = vmatpush1.bf16.msra.mxu0 0
    %392 = vmatprep.subr.bf16.mxu0 0
    %393 = vmatpush1.bf16.msra.mxu0 0
    %394 = vmatprep.subr.bf16.mxu0 0
    %395 = vmatpush1.bf16.msra.mxu0 0
    %396 = vmatprep.subr.bf16.mxu0 0
    %397 = vmatpush1.bf16.msra.mxu0 0
    %398 = vmatprep.subr.bf16.mxu0 0
    %399 = vmatpush1.bf16.msra.mxu0 0
    %400 = vmatprep.subr.bf16.mxu0 0
    %401 = vmatpush1.bf16.msra.mxu0 0
    %402 = vmatprep.subr.bf16.mxu0 0
    %403 = vmatpush1.bf16.msra.mxu0 0
    %404 = vmatprep.subr.bf16.mxu0 0
    %405 = vmatpush1.bf16.msra.mxu0 0
    %406 = vmatprep.subr.bf16.mxu0 0
    %407 = vmatpush1.bf16.msra.mxu0 0
    %408 = vmatprep.subr.bf16.mxu0 0
    %409 = vmatpush1.bf16.msra.mxu0 0
    %410 = vmatprep.subr.bf16.mxu0 0
    %411 = vmatpush1.bf16.msra.mxu0 0
    %412 = vmatprep.subr.bf16.mxu0 0
    %413 = vmatpush1.bf16.msra.mxu0 0
    %414 = vmatprep.mubr.bf16.mxu0 0
    %415 = vmatmul.mubr.bf16.gmra.mrb[0].mxu0 %v380
    %v416 = vpop.f32.mrb[0].mxu0
    %v417 = vadd.f32 %v81, %v416
    %v418 = vpop.f32.mrb[0].mxu0
    %v419 = vpop.f32.mrb[0].mxu0
    %v420 = vpop.f32.mrb[0].mxu0
    %421 = vdwg.mxu0
    %v422 = vxor.u32 %v417, 2147483648
    %v423 = vmul.f32 %v422, 1.442695
    %v424 = vpow.pop %v423
    %v425 = vadd.f32 %v424, 1.0
    %v426 = vrcp.pop %v425
    %v427 = vmul.f32 1.0, %v426
    %v428 = vtanh.pop %v417
    %v429 = vmul.f32 %v427, %v290
    %431 = vrot.lane.b32.xlu0 %v428, 32
    %v432 = vpop.permute.xlu0 %431
    %v434 = vmul.f32 %v427, %v432
    %436 = vrot.lane.b32.xlu0 %v434, 32
    %v437 = vpop.permute.xlu0 %436
    %v439 = vadd.f32 %v429, %v437
    %v440 = vtanh.pop %v439
    %442 = vrot.lane.b32.xlu0 %v440, 32
    %v443 = vpop.permute.xlu0 %442
    %v445 = vmul.f32 %v427, %v443
    %v446 = vpack.c.bf16 %v368, %v368
    %448 = vrot.lane.b32.xlu0 %v446, 64
    %v449 = vpop.permute.xlu0 %448
    %v451 = vsel %vm154, %v449, 0
    %453 = vmatprep.subr.bf16.mxu0 0
    %454 = vmatpush1.bf16.msra.mxu0 %v67
    %455 = vmatprep.subr.bf16.mxu0 0
    %456 = vmatpush1.bf16.msra.mxu0 %v68
    %457 = vmatprep.subr.bf16.mxu0 0
    %458 = vmatpush1.bf16.msra.mxu0 0
    %459 = vmatprep.subr.bf16.mxu0 0
    %460 = vmatpush1.bf16.msra.mxu0 0
    %461 = vmatprep.subr.bf16.mxu0 0
    %462 = vmatpush1.bf16.msra.mxu0 0
    %463 = vmatprep.subr.bf16.mxu0 0
    %464 = vmatpush1.bf16.msra.mxu0 0
    %465 = vmatprep.subr.bf16.mxu0 0
    %466 = vmatpush1.bf16.msra.mxu0 0
    %467 = vmatprep.subr.bf16.mxu0 0
    %468 = vmatpush1.bf16.msra.mxu0 0
    %469 = vmatprep.subr.bf16.mxu0 0
    %470 = vmatpush1.bf16.msra.mxu0 0
    %471 = vmatprep.subr.bf16.mxu0 0
    %472 = vmatpush1.bf16.msra.mxu0 0
    %473 = vmatprep.subr.bf16.mxu0 0
    %474 = vmatpush1.bf16.msra.mxu0 0
    %475 = vmatprep.subr.bf16.mxu0 0
    %476 = vmatpush1.bf16.msra.mxu0 0
    %477 = vmatprep.subr.bf16.mxu0 0
    %478 = vmatpush1.bf16.msra.mxu0 0
    %479 = vmatprep.subr.bf16.mxu0 0
    %480 = vmatpush1.bf16.msra.mxu0 0
    %481 = vmatprep.subr.bf16.mxu0 0
    %482 = vmatpush1.bf16.msra.mxu0 0
    %483 = vmatprep.subr.bf16.mxu0 0
    %484 = vmatpush1.bf16.msra.mxu0 0
    %485 = vmatprep.mubr.bf16.mxu0 0
    %486 = vmatmul.mubr.bf16.gmra.mrb[0].mxu0 %v451
    %v487 = vpop.f32.mrb[0].mxu0
    %v488 = vadd.f32 0.0, %v487
    %v489 = vpop.f32.mrb[0].mxu0
    %v490 = vpop.f32.mrb[0].mxu0
    %v491 = vpop.f32.mrb[0].mxu0
    %492 = vdwg.mxu0
    %v493 = vadd.f32 %v132, %v488
    %v494 = vxor.u32 %v493, 2147483648
    %v495 = vmul.f32 %v494, 1.442695
    %v496 = vpow.pop %v495
    %v497 = vadd.f32 %v496, 1.0
    %v498 = vrcp.pop %v497
    %v499 = vmul.f32 1.0, %v498
    %v500 = vtanh.pop %v493
    %v501 = vmul.f32 %v499, %v362
    %503 = vrot.lane.b32.xlu0 %v500, 32
    %v504 = vpop.permute.xlu0 %503
    %v506 = vmul.f32 %v499, %v504
    %508 = vrot.lane.b32.xlu0 %v506, 32
    %v509 = vpop.permute.xlu0 %508
    %v511 = vadd.f32 %v501, %v509
    %v512 = vtanh.pop %v511
    %514 = vrot.lane.b32.xlu0 %v512, 32
    %v515 = vpop.permute.xlu0 %514
    %v517 = vmul.f32 %v499, %v515
    %519 = vrot.lane.b32.xlu0 %v517, 64
    %v520 = vpop.permute.xlu0 %519
    %523 = vrot.lane.b32.xlu0 %v445, 96
    %v524 = vpop.permute.xlu0 %523
    %v526 = vsel %vm154, %v520, %v524
    %v527 = vpack.c.bf16 %v526, %v526
    %v529 = vsel %vm229, %v527, 0
    %531 = vmatprep.subr.bf16.mxu0 0
    %532 = vmatpush1.bf16.msra.mxu0 %v77
    %533 = vmatprep.subr.bf16.mxu0 0
    %534 = vmatpush1.bf16.msra.mxu0 %v78
    %535 = vmatprep.subr.bf16.mxu0 0
    %536 = vmatpush1.bf16.msra.mxu0 %v79
    %537 = vmatprep.subr.bf16.mxu0 0
    %538 = vmatpush1.bf16.msra.mxu0 %v80
    %539 = vmatprep.subr.bf16.mxu0 0
    %540 = vmatpush1.bf16.msra.mxu0 0
    %541 = vmatprep.subr.bf16.mxu0 0
    %542 = vmatpush1.bf16.msra.mxu0 0
    %543 = vmatprep.subr.bf16.mxu0 0
    %544 = vmatpush1.bf16.msra.mxu0 0
    %545 = vmatprep.subr.bf16.mxu0 0
    %546 = vmatpush1.bf16.msra.mxu0 0
    %547 = vmatprep.subr.bf16.mxu0 0
    %548 = vmatpush1.bf16.msra.mxu0 0
    %549 = vmatprep.subr.bf16.mxu0 0
    %550 = vmatpush1.bf16.msra.mxu0 0
    %551 = vmatprep.subr.bf16.mxu0 0
    %552 = vmatpush1.bf16.msra.mxu0 0
    %553 = vmatprep.subr.bf16.mxu0 0
    %554 = vmatpush1.bf16.msra.mxu0 0
    %555 = vmatprep.subr.bf16.mxu0 0
    %556 = vmatpush1.bf16.msra.mxu0 0
    %557 = vmatprep.subr.bf16.mxu0 0
    %558 = vmatpush1.bf16.msra.mxu0 0
    %559 = vmatprep.subr.bf16.mxu0 0
    %560 = vmatpush1.bf16.msra.mxu0 0
    %561 = vmatprep.subr.bf16.mxu0 0
    %562 = vmatpush1.bf16.msra.mxu0 0
    %563 = vmatprep.mubr.bf16.mxu0 0
    %564 = vmatmul.mubr.bf16.gmra.mrb[0].mxu0 %v529
    %v565 = vpop.f32.mrb[0].mxu0
    %v566 = vadd.f32 %v81, %v565
    %v567 = vpop.f32.mrb[0].mxu0
    %v568 = vpop.f32.mrb[0].mxu0
    %v569 = vpop.f32.mrb[0].mxu0
    %570 = vdwg.mxu0
    %v571 = vxor.u32 %v566, 2147483648
    %v572 = vmul.f32 %v571, 1.442695
    %v573 = vpow.pop %v572
    %v574 = vadd.f32 %v573, 1.0
    %v575 = vrcp.pop %v574
    %v576 = vmul.f32 1.0, %v575
    %v577 = vtanh.pop %v566
    %v578 = vmul.f32 %v576, %v439
    %580 = vrot.lane.b32.xlu0 %v577, 32
    %v581 = vpop.permute.xlu0 %580
    %v583 = vmul.f32 %v576, %v581
    %585 = vrot.lane.b32.xlu0 %v583, 32
    %v586 = vpop.permute.xlu0 %585
    %v588 = vadd.f32 %v578, %v586
    %v589 = vtanh.pop %v588
    %591 = vrot.lane.b32.xlu0 %v589, 32
    %v592 = vpop.permute.xlu0 %591
    %v594 = vmul.f32 %v576, %v592
    %v595 = vpack.c.bf16 %v517, %v517
    %597 = vrot.lane.b32.xlu0 %v595, 64
    %v598 = vpop.permute.xlu0 %597
    %v600 = vsel %vm154, %v598, 0
    %602 = vmatprep.subr.bf16.mxu0 0
    %603 = vmatpush1.bf16.msra.mxu0 %v67
    %604 = vmatprep.subr.bf16.mxu0 0
    %605 = vmatpush1.bf16.msra.mxu0 %v68
    %606 = vmatprep.subr.bf16.mxu0 0
    %607 = vmatpush1.bf16.msra.mxu0 0
    %608 = vmatprep.subr.bf16.mxu0 0
    %609 = vmatpush1.bf16.msra.mxu0 0
    %610 = vmatprep.subr.bf16.mxu0 0
    %611 = vmatpush1.bf16.msra.mxu0 0
    %612 = vmatprep.subr.bf16.mxu0 0
    %613 = vmatpush1.bf16.msra.mxu0 0
    %614 = vmatprep.subr.bf16.mxu0 0
    %615 = vmatpush1.bf16.msra.mxu0 0
    %616 = vmatprep.subr.bf16.mxu0 0
    %617 = vmatpush1.bf16.msra.mxu0 0
    %618 = vmatprep.subr.bf16.mxu0 0
    %619 = vmatpush1.bf16.msra.mxu0 0
    %620 = vmatprep.subr.bf16.mxu0 0
    %621 = vmatpush1.bf16.msra.mxu0 0
    %622 = vmatprep.subr.bf16.mxu0 0
    %623 = vmatpush1.bf16.msra.mxu0 0
    %624 = vmatprep.subr.bf16.mxu0 0
    %625 = vmatpush1.bf16.msra.mxu0 0
    %626 = vmatprep.subr.bf16.mxu0 0
    %627 = vmatpush1.bf16.msra.mxu0 0
    %628 = vmatprep.subr.bf16.mxu0 0
    %629 = vmatpush1.bf16.msra.mxu0 0
    %630 = vmatprep.subr.bf16.mxu0 0
    %631 = vmatpush1.bf16.msra.mxu0 0
    %632 = vmatprep.subr.bf16.mxu0 0
    %633 = vmatpush1.bf16.msra.mxu0 0
    %634 = vmatprep.mubr.bf16.mxu0 0
    %635 = vmatmul.mubr.bf16.gmra.mrb[0].mxu0 %v600
    %v636 = vpop.f32.mrb[0].mxu0
    %v637 = vadd.f32 0.0, %v636
    %v638 = vpop.f32.mrb[0].mxu0
    %v639 = vpop.f32.mrb[0].mxu0
    %v640 = vpop.f32.mrb[0].mxu0
    %641 = vdwg.mxu0
    %v642 = vadd.f32 %v135, %v637
    %v643 = vxor.u32 %v642, 2147483648
    %v644 = vmul.f32 %v643, 1.442695
    %v645 = vpow.pop %v644
    %v646 = vadd.f32 %v645, 1.0
    %v647 = vrcp.pop %v646
    %v648 = vmul.f32 1.0, %v647
    %v649 = vtanh.pop %v642
    %v650 = vmul.f32 %v648, %v511
    %652 = vrot.lane.b32.xlu0 %v649, 32
    %v653 = vpop.permute.xlu0 %652
    %v655 = vmul.f32 %v648, %v653
    %657 = vrot.lane.b32.xlu0 %v655, 32
    %v658 = vpop.permute.xlu0 %657
    %v660 = vadd.f32 %v650, %v658
    %v661 = vtanh.pop %v660
    %663 = vrot.lane.b32.xlu0 %v661, 32
    %v664 = vpop.permute.xlu0 %663
    %v666 = vmul.f32 %v648, %v664
    %668 = vrot.lane.b32.xlu0 %v666, 64
    %v669 = vpop.permute.xlu0 %668
    %672 = vrot.lane.b32.xlu0 %v594, 96
    %v673 = vpop.permute.xlu0 %672
    %v675 = vsel %vm154, %v669, %v673
    %v676 = vpack.c.bf16 %v675, %v675
    %v678 = vsel %vm229, %v676, 0
    %680 = vmatprep.subr.bf16.mxu0 0
    %681 = vmatpush1.bf16.msra.mxu0 %v77
    %682 = vmatprep.subr.bf16.mxu0 0
    %683 = vmatpush1.bf16.msra.mxu0 %v78
    %684 = vmatprep.subr.bf16.mxu0 0
    %685 = vmatpush1.bf16.msra.mxu0 %v79
    %686 = vmatprep.subr.bf16.mxu0 0
    %687 = vmatpush1.bf16.msra.mxu0 %v80
    %688 = vmatprep.subr.bf16.mxu0 0
    %689 = vmatpush1.bf16.msra.mxu0 0
    %690 = vmatprep.subr.bf16.mxu0 0
    %691 = vmatpush1.bf16.msra.mxu0 0
    %692 = vmatprep.subr.bf16.mxu0 0
    %693 = vmatpush1.bf16.msra.mxu0 0
    %694 = vmatprep.subr.bf16.mxu0 0
    %695 = vmatpush1.bf16.msra.mxu0 0
    %696 = vmatprep.subr.bf16.mxu0 0
    %697 = vmatpush1.bf16.msra.mxu0 0
    %698 = vmatprep.subr.bf16.mxu0 0
    %699 = vmatpush1.bf16.msra.mxu0 0
    %700 = vmatprep.subr.bf16.mxu0 0
    %701 = vmatpush1.bf16.msra.mxu0 0
    %702 = vmatprep.subr.bf16.mxu0 0
    %703 = vmatpush1.bf16.msra.mxu0 0
    %704 = vmatprep.subr.bf16.mxu0 0
    %705 = vmatpush1.bf16.msra.mxu0 0
    %706 = vmatprep.subr.bf16.mxu0 0
    %707 = vmatpush1.bf16.msra.mxu0 0
    %708 = vmatprep.subr.bf16.mxu0 0
    %709 = vmatpush1.bf16.msra.mxu0 0
    %710 = vmatprep.subr.bf16.mxu0 0
    %711 = vmatpush1.bf16.msra.mxu0 0
    %712 = vmatprep.mubr.bf16.mxu0 0
    %713 = vmatmul.mubr.bf16.gmra.mrb[0].mxu0 %v678
    %v714 = vpop.f32.mrb[0].mxu0
    %v715 = vadd.f32 %v81, %v714
    %v716 = vpop.f32.mrb[0].mxu0
    %v717 = vpop.f32.mrb[0].mxu0
    %v718 = vpop.f32.mrb[0].mxu0
    %719 = vdwg.mxu0
    %v720 = vxor.u32 %v715, 2147483648
    %v721 = vmul.f32 %v720, 1.442695
    %v722 = vpow.pop %v721
    %v723 = vadd.f32 %v722, 1.0
    %v724 = vrcp.pop %v723
    %v725 = vmul.f32 1.0, %v724
    %v726 = vtanh.pop %v715
    %v727 = vmul.f32 %v725, %v588
    %729 = vrot.lane.b32.xlu0 %v726, 32
    %v730 = vpop.permute.xlu0 %729
    %v732 = vmul.f32 %v725, %v730
    %734 = vrot.lane.b32.xlu0 %v732, 32
    %v735 = vpop.permute.xlu0 %734
    %v737 = vadd.f32 %v727, %v735
    %v738 = vtanh.pop %v737
    %740 = vrot.lane.b32.xlu0 %v738, 32
    %v741 = vpop.permute.xlu0 %740
    %v743 = vmul.f32 %v725, %v741
    %v744 = vpack.c.bf16 %v666, %v666
    %746 = vrot.lane.b32.xlu0 %v744, 64
    %v747 = vpop.permute.xlu0 %746
    %v749 = vsel %vm154, %v747, 0
    %751 = vmatprep.subr.bf16.mxu0 0
    %752 = vmatpush1.bf16.msra.mxu0 %v67
    %753 = vmatprep.subr.bf16.mxu0 0
    %754 = vmatpush1.bf16.msra.mxu0 %v68
    %755 = vmatprep.subr.bf16.mxu0 0
    %756 = vmatpush1.bf16.msra.mxu0 0
    %757 = vmatprep.subr.bf16.mxu0 0
    %758 = vmatpush1.bf16.msra.mxu0 0
    %759 = vmatprep.subr.bf16.mxu0 0
    %760 = vmatpush1.bf16.msra.mxu0 0
    %761 = vmatprep.subr.bf16.mxu0 0
    %762 = vmatpush1.bf16.msra.mxu0 0
    %763 = vmatprep.subr.bf16.mxu0 0
    %764 = vmatpush1.bf16.msra.mxu0 0
    %765 = vmatprep.subr.bf16.mxu0 0
    %766 = vmatpush1.bf16.msra.mxu0 0
    %767 = vmatprep.subr.bf16.mxu0 0
    %768 = vmatpush1.bf16.msra.mxu0 0
    %769 = vmatprep.subr.bf16.mxu0 0
    %770 = vmatpush1.bf16.msra.mxu0 0
    %771 = vmatprep.subr.bf16.mxu0 0
    %772 = vmatpush1.bf16.msra.mxu0 0
    %773 = vmatprep.subr.bf16.mxu0 0
    %774 = vmatpush1.bf16.msra.mxu0 0
    %775 = vmatprep.subr.bf16.mxu0 0
    %776 = vmatpush1.bf16.msra.mxu0 0
    %777 = vmatprep.subr.bf16.mxu0 0
    %778 = vmatpush1.bf16.msra.mxu0 0
    %779 = vmatprep.subr.bf16.mxu0 0
    %780 = vmatpush1.bf16.msra.mxu0 0
    %781 = vmatprep.subr.bf16.mxu0 0
    %782 = vmatpush1.bf16.msra.mxu0 0
    %783 = vmatprep.mubr.bf16.mxu0 0
    %784 = vmatmul.mubr.bf16.gmra.mrb[0].mxu0 %v749
    %v785 = vpop.f32.mrb[0].mxu0
    %v786 = vadd.f32 0.0, %v785
    %v787 = vpop.f32.mrb[0].mxu0
    %v788 = vpop.f32.mrb[0].mxu0
    %v789 = vpop.f32.mrb[0].mxu0
    %790 = vdwg.mxu0
    %v791 = vadd.f32 %v140, %v786
    %v792 = vxor.u32 %v791, 2147483648
    %v793 = vmul.f32 %v792, 1.442695
    %v794 = vpow.pop %v793
    %v795 = vadd.f32 %v794, 1.0
    %v796 = vrcp.pop %v795
    %v797 = vmul.f32 1.0, %v796
    %v798 = vtanh.pop %v791
    %v799 = vmul.f32 %v797, %v660
    %801 = vrot.lane.b32.xlu0 %v798, 32
    %v802 = vpop.permute.xlu0 %801
    %v804 = vmul.f32 %v797, %v802
    %806 = vrot.lane.b32.xlu0 %v804, 32
    %v807 = vpop.permute.xlu0 %806
    %v809 = vadd.f32 %v799, %v807
    %v810 = vtanh.pop %v809
    %812 = vrot.lane.b32.xlu0 %v810, 32
    %v813 = vpop.permute.xlu0 %812
    %v815 = vmul.f32 %v797, %v813
    %817 = vrot.lane.b32.xlu0 %v815, 64
    %v818 = vpop.permute.xlu0 %817
    %821 = vrot.lane.b32.xlu0 %v743, 96
    %v822 = vpop.permute.xlu0 %821
    %v824 = vsel %vm154, %v818, %v822
    %v825 = vpack.c.bf16 %v824, %v824
    %v827 = vsel %vm229, %v825, 0
    %829 = vmatprep.subr.bf16.mxu0 0
    %830 = vmatpush1.bf16.msra.mxu0 %v77
    %831 = vmatprep.subr.bf16.mxu0 0
    %832 = vmatpush1.bf16.msra.mxu0 %v78
    %833 = vmatprep.subr.bf16.mxu0 0
    %834 = vmatpush1.bf16.msra.mxu0 %v79
    %835 = vmatprep.subr.bf16.mxu0 0
    %836 = vmatpush1.bf16.msra.mxu0 %v80
    %837 = vmatprep.subr.bf16.mxu0 0
    %838 = vmatpush1.bf16.msra.mxu0 0
    %839 = vmatprep.subr.bf16.mxu0 0
    %840 = vmatpush1.bf16.msra.mxu0 0
    %841 = vmatprep.subr.bf16.mxu0 0
    %842 = vmatpush1.bf16.msra.mxu0 0
    %843 = vmatprep.subr.bf16.mxu0 0
    %844 = vmatpush1.bf16.msra.mxu0 0
    %845 = vmatprep.subr.bf16.mxu0 0
    %846 = vmatpush1.bf16.msra.mxu0 0
    %847 = vmatprep.subr.bf16.mxu0 0
    %848 = vmatpush1.bf16.msra.mxu0 0
    %849 = vmatprep.subr.bf16.mxu0 0
    %850 = vmatpush1.bf16.msra.mxu0 0
    %851 = vmatprep.subr.bf16.mxu0 0
    %852 = vmatpush1.bf16.msra.mxu0 0
    %853 = vmatprep.subr.bf16.mxu0 0
    %854 = vmatpush1.bf16.msra.mxu0 0
    %855 = vmatprep.subr.bf16.mxu0 0
    %856 = vmatpush1.bf16.msra.mxu0 0
    %857 = vmatprep.subr.bf16.mxu0 0
    %858 = vmatpush1.bf16.msra.mxu0 0
    %859 = vmatprep.subr.bf16.mxu0 0
    %860 = vmatpush1.bf16.msra.mxu0 0
    %861 = vmatprep.mubr.bf16.mxu0 0
    %862 = vmatmul.mubr.bf16.gmra.mrb[0].mxu0 %v827
    %v863 = vpop.f32.mrb[0].mxu0
    %v864 = vadd.f32 %v81, %v863
    %v865 = vpop.f32.mrb[0].mxu0
    %v866 = vpop.f32.mrb[0].mxu0
    %v867 = vpop.f32.mrb[0].mxu0
    %868 = vdwg.mxu0
    %v869 = vxor.u32 %v864, 2147483648
    %v870 = vmul.f32 %v869, 1.442695
    %v871 = vpow.pop %v870
    %v872 = vadd.f32 %v871, 1.0
    %v873 = vrcp.pop %v872
    %v874 = vmul.f32 1.0, %v873
    %v875 = vtanh.pop %v864
    %v876 = vmul.f32 %v874, %v737
    %878 = vrot.lane.b32.xlu0 %v875, 32
    %v879 = vpop.permute.xlu0 %878
    %v881 = vmul.f32 %v874, %v879
    %883 = vrot.lane.b32.xlu0 %v881, 32
    %v884 = vpop.permute.xlu0 %883
    %v886 = vadd.f32 %v876, %v884
    %v887 = vtanh.pop %v886
    %889 = vrot.lane.b32.xlu0 %v887, 32
    %v890 = vpop.permute.xlu0 %889
    %v892 = vmul.f32 %v874, %v890
    %v893 = vpack.c.bf16 %v815, %v815
    %895 = vrot.lane.b32.xlu0 %v893, 64
    %v896 = vpop.permute.xlu0 %895
    %v898 = vsel %vm154, %v896, 0
    %900 = vmatprep.subr.bf16.mxu0 0
    %901 = vmatpush1.bf16.msra.mxu0 %v67
    %902 = vmatprep.subr.bf16.mxu0 0
    %903 = vmatpush1.bf16.msra.mxu0 %v68
    %904 = vmatprep.subr.bf16.mxu0 0
    %905 = vmatpush1.bf16.msra.mxu0 0
    %906 = vmatprep.subr.bf16.mxu0 0
    %907 = vmatpush1.bf16.msra.mxu0 0
    %908 = vmatprep.subr.bf16.mxu0 0
    %909 = vmatpush1.bf16.msra.mxu0 0
    %910 = vmatprep.subr.bf16.mxu0 0
    %911 = vmatpush1.bf16.msra.mxu0 0
    %912 = vmatprep.subr.bf16.mxu0 0
    %913 = vmatpush1.bf16.msra.mxu0 0
    %914 = vmatprep.subr.bf16.mxu0 0
    %915 = vmatpush1.bf16.msra.mxu0 0
    %916 = vmatprep.subr.bf16.mxu0 0
    %917 = vmatpush1.bf16.msra.mxu0 0
    %918 = vmatprep.subr.bf16.mxu0 0
    %919 = vmatpush1.bf16.msra.mxu0 0
    %920 = vmatprep.subr.bf16.mxu0 0
    %921 = vmatpush1.bf16.msra.mxu0 0
    %922 = vmatprep.subr.bf16.mxu0 0
    %923 = vmatpush1.bf16.msra.mxu0 0
    %924 = vmatprep.subr.bf16.mxu0 0
    %925 = vmatpush1.bf16.msra.mxu0 0
    %926 = vmatprep.subr.bf16.mxu0 0
    %927 = vmatpush1.bf16.msra.mxu0 0
    %928 = vmatprep.subr.bf16.mxu0 0
    %929 = vmatpush1.bf16.msra.mxu0 0
    %930 = vmatprep.subr.bf16.mxu0 0
    %931 = vmatpush1.bf16.msra.mxu0 0
    %932 = vmatprep.mubr.bf16.mxu0 0
    %933 = vmatmul.mubr.bf16.gmra.mrb[0].mxu0 %v898
    %v934 = vpop.f32.mrb[0].mxu0
    %v935 = vadd.f32 0.0, %v934
    %v936 = vpop.f32.mrb[0].mxu0
    %v937 = vpop.f32.mrb[0].mxu0
    %v938 = vpop.f32.mrb[0].mxu0
    %939 = vdwg.mxu0
    %v940 = vadd.f32 %v143, %v935
    %v941 = vxor.u32 %v940, 2147483648
    %v942 = vmul.f32 %v941, 1.442695
    %v943 = vpow.pop %v942
    %v944 = vadd.f32 %v943, 1.0
    %v945 = vrcp.pop %v944
    %v946 = vmul.f32 1.0, %v945
    %v947 = vtanh.pop %v940
    %v948 = vmul.f32 %v946, %v809
    %950 = vrot.lane.b32.xlu0 %v947, 32
    %v951 = vpop.permute.xlu0 %950
    %v953 = vmul.f32 %v946, %v951
    %955 = vrot.lane.b32.xlu0 %v953, 32
    %v956 = vpop.permute.xlu0 %955
    %v958 = vadd.f32 %v948, %v956
    %v959 = vtanh.pop %v958
    %961 = vrot.lane.b32.xlu0 %v959, 32
    %v962 = vpop.permute.xlu0 %961
    %v964 = vmul.f32 %v946, %v962
    %966 = vrot.lane.b32.xlu0 %v964, 64
    %v967 = vpop.permute.xlu0 %966
    %970 = vrot.lane.b32.xlu0 %v892, 96
    %v971 = vpop.permute.xlu0 %970
    %v973 = vsel %vm154, %v967, %v971
    %v974 = vpack.c.bf16 %v973, %v973
    %v976 = vsel %vm229, %v974, 0
    %978 = vmatprep.subr.bf16.mxu0 0
    %979 = vmatpush1.bf16.msra.mxu0 %v77
    %980 = vmatprep.subr.bf16.mxu0 0
    %981 = vmatpush1.bf16.msra.mxu0 %v78
    %982 = vmatprep.subr.bf16.mxu0 0
    %983 = vmatpush1.bf16.msra.mxu0 %v79
    %984 = vmatprep.subr.bf16.mxu0 0
    %985 = vmatpush1.bf16.msra.mxu0 %v80
    %986 = vmatprep.subr.bf16.mxu0 0
    %987 = vmatpush1.bf16.msra.mxu0 0
    %988 = vmatprep.subr.bf16.mxu0 0
    %989 = vmatpush1.bf16.msra.mxu0 0
    %990 = vmatprep.subr.bf16.mxu0 0
    %991 = vmatpush1.bf16.msra.mxu0 0
    %992 = vmatprep.subr.bf16.mxu0 0
    %993 = vmatpush1.bf16.msra.mxu0 0
    %994 = vmatprep.subr.bf16.mxu0 0
    %995 = vmatpush1.bf16.msra.mxu0 0
    %996 = vmatprep.subr.bf16.mxu0 0
    %997 = vmatpush1.bf16.msra.mxu0 0
    %998 = vmatprep.subr.bf16.mxu0 0
    %999 = vmatpush1.bf16.msra.mxu0 0
    %1000 = vmatprep.subr.bf16.mxu0 0
    %1001 = vmatpush1.bf16.msra.mxu0 0
    %1002 = vmatprep.subr.bf16.mxu0 0
    %1003 = vmatpush1.bf16.msra.mxu0 0
    %1004 = vmatprep.subr.bf16.mxu0 0
    %1005 = vmatpush1.bf16.msra.mxu0 0
    %1006 = vmatprep.subr.bf16.mxu0 0
    %1007 = vmatpush1.bf16.msra.mxu0 0
    %1008 = vmatprep.subr.bf16.mxu0 0
    %1009 = vmatpush1.bf16.msra.mxu0 0
    %1010 = vmatprep.mubr.bf16.mxu0 0
    %1011 = vmatmul.mubr.bf16.gmra.mrb[0].mxu0 %v976
    %v1012 = vpop.f32.mrb[0].mxu0
    %v1013 = vadd.f32 %v81, %v1012
    %v1014 = vpop.f32.mrb[0].mxu0
    %v1015 = vpop.f32.mrb[0].mxu0
    %v1016 = vpop.f32.mrb[0].mxu0
    %1017 = vdwg.mxu0
    %v1018 = vxor.u32 %v1013, 2147483648
    %v1019 = vmul.f32 %v1018, 1.442695
    %v1020 = vpow.pop %v1019
    %v1021 = vadd.f32 %v1020, 1.0
    %v1022 = vrcp.pop %v1021
    %v1023 = vmul.f32 1.0, %v1022
    %v1024 = vtanh.pop %v1013
    %v1025 = vmul.f32 %v1023, %v886
    %1027 = vrot.lane.b32.xlu0 %v1024, 32
    %v1028 = vpop.permute.xlu0 %1027
    %v1030 = vmul.f32 %v1023, %v1028
    %1032 = vrot.lane.b32.xlu0 %v1030, 32
    %v1033 = vpop.permute.xlu0 %1032
    %v1035 = vadd.f32 %v1025, %v1033
    %v1036 = vtanh.pop %v1035
    %1038 = vrot.lane.b32.xlu0 %v1036, 32
    %v1039 = vpop.permute.xlu0 %1038
    %v1041 = vmul.f32 %v1023, %v1039
    %v1042 = vpack.c.bf16 %v964, %v964
    %1044 = vrot.lane.b32.xlu0 %v1042, 64
    %v1045 = vpop.permute.xlu0 %1044
    %v1047 = vsel %vm154, %v1045, 0
    %1049 = vmatprep.subr.bf16.mxu0 0
    %1050 = vmatpush1.bf16.msra.mxu0 %v67
    %1051 = vmatprep.subr.bf16.mxu0 0
    %1052 = vmatpush1.bf16.msra.mxu0 %v68
    %1053 = vmatprep.subr.bf16.mxu0 0
    %1054 = vmatpush1.bf16.msra.mxu0 0
    %1055 = vmatprep.subr.bf16.mxu0 0
    %1056 = vmatpush1.bf16.msra.mxu0 0
    %1057 = vmatprep.subr.bf16.mxu0 0
    %1058 = vmatpush1.bf16.msra.mxu0 0
    %1059 = vmatprep.subr.bf16.mxu0 0
    %1060 = vmatpush1.bf16.msra.mxu0 0
    %1061 = vmatprep.subr.bf16.mxu0 0
    %1062 = vmatpush1.bf16.msra.mxu0 0
    %1063 = vmatprep.subr.bf16.mxu0 0
    %1064 = vmatpush1.bf16.msra.mxu0 0
    %1065 = vmatprep.subr.bf16.mxu0 0
    %1066 = vmatpush1.bf16.msra.mxu0 0
    %1067 = vmatprep.subr.bf16.mxu0 0
    %1068 = vmatpush1.bf16.msra.mxu0 0
    %1069 = vmatprep.subr.bf16.mxu0 0
    %1070 = vmatpush1.bf16.msra.mxu0 0
    %1071 = vmatprep.subr.bf16.mxu0 0
    %1072 = vmatpush1.bf16.msra.mxu0 0
    %1073 = vmatprep.subr.bf16.mxu0 0
    %1074 = vmatpush1.bf16.msra.mxu0 0
    %1075 = vmatprep.subr.bf16.mxu0 0
    %1076 = vmatpush1.bf16.msra.mxu0 0
    %1077 = vmatprep.subr.bf16.mxu0 0
    %1078 = vmatpush1.bf16.msra.mxu0 0
    %1079 = vmatprep.subr.bf16.mxu0 0
    %1080 = vmatpush1.bf16.msra.mxu0 0
    %1081 = vmatprep.mubr.bf16.mxu0 0
    %1082 = vmatmul.mubr.bf16.gmra.mrb[0].mxu0 %v1047
    %v1083 = vpop.f32.mrb[0].mxu0
    %v1084 = vadd.f32 0.0, %v1083
    %v1085 = vpop.f32.mrb[0].mxu0
    %v1086 = vpop.f32.mrb[0].mxu0
    %v1087 = vpop.f32.mrb[0].mxu0
    %1088 = vdwg.mxu0
    %v1089 = vadd.f32 %v148, %v1084
    %v1090 = vxor.u32 %v1089, 2147483648
    %v1091 = vmul.f32 %v1090, 1.442695
    %v1092 = vpow.pop %v1091
    %v1093 = vadd.f32 %v1092, 1.0
    %v1094 = vrcp.pop %v1093
    %v1095 = vmul.f32 1.0, %v1094
    %v1096 = vtanh.pop %v1089
    %v1097 = vmul.f32 %v1095, %v958
    %1099 = vrot.lane.b32.xlu0 %v1096, 32
    %v1100 = vpop.permute.xlu0 %1099
    %v1102 = vmul.f32 %v1095, %v1100
    %1104 = vrot.lane.b32.xlu0 %v1102, 32
    %v1105 = vpop.permute.xlu0 %1104
    %v1107 = vadd.f32 %v1097, %v1105
    %v1108 = vtanh.pop %v1107
    %1110 = vrot.lane.b32.xlu0 %v1108, 32
    %v1111 = vpop.permute.xlu0 %1110
    %v1113 = vmul.f32 %v1095, %v1111
    %1115 = vrot.lane.b32.xlu0 %v1113, 64
    %v1116 = vpop.permute.xlu0 %1115
    %1119 = vrot.lane.b32.xlu0 %v1041, 96
    %v1120 = vpop.permute.xlu0 %1119
    %v1122 = vsel %vm154, %v1116, %v1120
    %v1123 = vpack.c.bf16 %v1122, %v1122
    %v1125 = vsel %vm229, %v1123, 0
    %1127 = vmatprep.subr.bf16.mxu0 0
    %1128 = vmatpush1.bf16.msra.mxu0 %v77
    %1129 = vmatprep.subr.bf16.mxu0 0
    %1130 = vmatpush1.bf16.msra.mxu0 %v78
    %1131 = vmatprep.subr.bf16.mxu0 0
    %1132 = vmatpush1.bf16.msra.mxu0 %v79
    %1133 = vmatprep.subr.bf16.mxu0 0
    %1134 = vmatpush1.bf16.msra.mxu0 %v80
    %1135 = vmatprep.subr.bf16.mxu0 0
    %1136 = vmatpush1.bf16.msra.mxu0 0
    %1137 = vmatprep.subr.bf16.mxu0 0
    %1138 = vmatpush1.bf16.msra.mxu0 0
    %1139 = vmatprep.subr.bf16.mxu0 0
    %1140 = vmatpush1.bf16.msra.mxu0 0
    %1141 = vmatprep.subr.bf16.mxu0 0
    %1142 = vmatpush1.bf16.msra.mxu0 0
    %1143 = vmatprep.subr.bf16.mxu0 0
    %1144 = vmatpush1.bf16.msra.mxu0 0
    %1145 = vmatprep.subr.bf16.mxu0 0
    %1146 = vmatpush1.bf16.msra.mxu0 0
    %1147 = vmatprep.subr.bf16.mxu0 0
    %1148 = vmatpush1.bf16.msra.mxu0 0
    %1149 = vmatprep.subr.bf16.mxu0 0
    %1150 = vmatpush1.bf16.msra.mxu0 0
    %1151 = vmatprep.subr.bf16.mxu0 0
    %1152 = vmatpush1.bf16.msra.mxu0 0
    %1153 = vmatprep.subr.bf16.mxu0 0
    %1154 = vmatpush1.bf16.msra.mxu0 0
    %1155 = vmatprep.subr.bf16.mxu0 0
    %1156 = vmatpush1.bf16.msra.mxu0 0
    %1157 = vmatprep.subr.bf16.mxu0 0
    %1158 = vmatpush1.bf16.msra.mxu0 0
    %1159 = vmatprep.mubr.bf16.mxu0 0
    %1160 = vmatmul.mubr.bf16.gmra.mrb[0].mxu0 %v1125
    %v1161 = vpop.f32.mrb[0].mxu0
    %v1162 = vadd.f32 %v81, %v1161
    %v1163 = vpop.f32.mrb[0].mxu0
    %v1164 = vpop.f32.mrb[0].mxu0
    %v1165 = vpop.f32.mrb[0].mxu0
    %1166 = vdwg.mxu0
    %v1167 = vxor.u32 %v1162, 2147483648
    %v1168 = vmul.f32 %v1167, 1.442695
    %v1169 = vpow.pop %v1168
    %v1170 = vadd.f32 %v1169, 1.0
    %v1171 = vrcp.pop %v1170
    %v1172 = vmul.f32 1.0, %v1171
    %v1173 = vtanh.pop %v1162
    %v1174 = vmul.f32 %v1172, %v1035
    %1176 = vrot.lane.b32.xlu0 %v1173, 32
    %v1177 = vpop.permute.xlu0 %1176
    %v1179 = vmul.f32 %v1172, %v1177
    %1181 = vrot.lane.b32.xlu0 %v1179, 32
    %v1182 = vpop.permute.xlu0 %1181
    %v1184 = vadd.f32 %v1174, %v1182
    %v1185 = vtanh.pop %v1184
    %1187 = vrot.lane.b32.xlu0 %v1185, 32
    %v1188 = vpop.permute.xlu0 %1187
    %v1190 = vmul.f32 %v1172, %v1188
    %v1191 = vpack.c.bf16 %v1113, %v1113
    %1193 = vrot.lane.b32.xlu0 %v1191, 64
    %v1194 = vpop.permute.xlu0 %1193
    %v1196 = vsel %vm154, %v1194, 0
    %1198 = vmatprep.subr.bf16.mxu0 0
    %1199 = vmatpush1.bf16.msra.mxu0 %v67
    %1200 = vmatprep.subr.bf16.mxu0 0
    %1201 = vmatpush1.bf16.msra.mxu0 %v68
    %1202 = vmatprep.subr.bf16.mxu0 0
    %1203 = vmatpush1.bf16.msra.mxu0 0
    %1204 = vmatprep.subr.bf16.mxu0 0
    %1205 = vmatpush1.bf16.msra.mxu0 0
    %1206 = vmatprep.subr.bf16.mxu0 0
    %1207 = vmatpush1.bf16.msra.mxu0 0
    %1208 = vmatprep.subr.bf16.mxu0 0
    %1209 = vmatpush1.bf16.msra.mxu0 0
    %1210 = vmatprep.subr.bf16.mxu0 0
    %1211 = vmatpush1.bf16.msra.mxu0 0
    %1212 = vmatprep.subr.bf16.mxu0 0
    %1213 = vmatpush1.bf16.msra.mxu0 0
    %1214 = vmatprep.subr.bf16.mxu0 0
    %1215 = vmatpush1.bf16.msra.mxu0 0
    %1216 = vmatprep.subr.bf16.mxu0 0
    %1217 = vmatpush1.bf16.msra.mxu0 0
    %1218 = vmatprep.subr.bf16.mxu0 0
    %1219 = vmatpush1.bf16.msra.mxu0 0
    %1220 = vmatprep.subr.bf16.mxu0 0
    %1221 = vmatpush1.bf16.msra.mxu0 0
    %1222 = vmatprep.subr.bf16.mxu0 0
    %1223 = vmatpush1.bf16.msra.mxu0 0
    %1224 = vmatprep.subr.bf16.mxu0 0
    %1225 = vmatpush1.bf16.msra.mxu0 0
    %1226 = vmatprep.subr.bf16.mxu0 0
    %1227 = vmatpush1.bf16.msra.mxu0 0
    %1228 = vmatprep.subr.bf16.mxu0 0
    %1229 = vmatpush1.bf16.msra.mxu0 0
    %1230 = vmatprep.mubr.bf16.mxu0 0
    %1231 = vmatmul.mubr.bf16.gmra.mrb[0].mxu0 %v1196
    %v1232 = vpop.f32.mrb[0].mxu0
    %v1233 = vadd.f32 0.0, %v1232
    %v1234 = vpop.f32.mrb[0].mxu0
    %v1235 = vpop.f32.mrb[0].mxu0
    %v1236 = vpop.f32.mrb[0].mxu0
    %1237 = vdwg.mxu0
    %v1238 = vadd.f32 %v151, %v1233
    %v1239 = vxor.u32 %v1238, 2147483648
    %v1240 = vmul.f32 %v1239, 1.442695
    %v1241 = vpow.pop %v1240
    %v1242 = vadd.f32 %v1241, 1.0
    %v1243 = vrcp.pop %v1242
    %v1244 = vmul.f32 1.0, %v1243
    %v1245 = vtanh.pop %v1238
    %v1246 = vmul.f32 %v1244, %v1107
    %1248 = vrot.lane.b32.xlu0 %v1245, 32
    %v1249 = vpop.permute.xlu0 %1248
    %v1251 = vmul.f32 %v1244, %v1249
    %1253 = vrot.lane.b32.xlu0 %v1251, 32
    %v1254 = vpop.permute.xlu0 %1253
    %v1256 = vadd.f32 %v1246, %v1254
    %v1257 = vtanh.pop %v1256
    %1259 = vrot.lane.b32.xlu0 %v1257, 32
    %v1260 = vpop.permute.xlu0 %1259
    %v1262 = vmul.f32 %v1244, %v1260
    %1264 = vrot.lane.b32.xlu0 %v1262, 64
    %v1265 = vpop.permute.xlu0 %1264
    %1268 = vrot.lane.b32.xlu0 %v1190, 96
    %v1269 = vpop.permute.xlu0 %1268
    %v1271 = vsel %vm154, %v1265, %v1269
    %v1272 = vpack.c.bf16 %v1271, %v1271
    %v1274 = vsel %vm229, %v1272, 0
    %1276 = vmatprep.subr.bf16.mxu0 0
    %1277 = vmatpush1.bf16.msra.mxu0 %v77
    %1278 = vmatprep.subr.bf16.mxu0 0
    %1279 = vmatpush1.bf16.msra.mxu0 %v78
    %1280 = vmatprep.subr.bf16.mxu0 0
    %1281 = vmatpush1.bf16.msra.mxu0 %v79
    %1282 = vmatprep.subr.bf16.mxu0 0
    %1283 = vmatpush1.bf16.msra.mxu0 %v80
    %1284 = vmatprep.subr.bf16.mxu0 0
    %1285 = vmatpush1.bf16.msra.mxu0 0
    %1286 = vmatprep.subr.bf16.mxu0 0
    %1287 = vmatpush1.bf16.msra.mxu0 0
    %1288 = vmatprep.subr.bf16.mxu0 0
    %1289 = vmatpush1.bf16.msra.mxu0 0
    %1290 = vmatprep.subr.bf16.mxu0 0
    %1291 = vmatpush1.bf16.msra.mxu0 0
    %1292 = vmatprep.subr.bf16.mxu0 0
    %1293 = vmatpush1.bf16.msra.mxu0 0
    %1294 = vmatprep.subr.bf16.mxu0 0
    %1295 = vmatpush1.bf16.msra.mxu0 0
    %1296 = vmatprep.subr.bf16.mxu0 0
    %1297 = vmatpush1.bf16.msra.mxu0 0
    %1298 = vmatprep.subr.bf16.mxu0 0
    %1299 = vmatpush1.bf16.msra.mxu0 0
    %1300 = vmatprep.subr.bf16.mxu0 0
    %1301 = vmatpush1.bf16.msra.mxu0 0
    %1302 = vmatprep.subr.bf16.mxu0 0
    %1303 = vmatpush1.bf16.msra.mxu0 0
    %1304 = vmatprep.subr.bf16.mxu0 0
    %1305 = vmatpush1.bf16.msra.mxu0 0
    %1306 = vmatprep.subr.bf16.mxu0 0
    %1307 = vmatpush1.bf16.msra.mxu0 0
    %1308 = vmatprep.mubr.bf16.mxu0 0
    %1309 = vmatmul.mubr.bf16.gmra.mrb[0].mxu0 %v1274
    %v1310 = vpop.f32.mrb[0].mxu0
    %v1311 = vadd.f32 %v81, %v1310
    %v1312 = vpop.f32.mrb[0].mxu0
    %v1313 = vpop.f32.mrb[0].mxu0
    %v1314 = vpop.f32.mrb[0].mxu0
    %1315 = vdwg.mxu0
    %v1316 = vxor.u32 %v1311, 2147483648
    %v1317 = vmul.f32 %v1316, 1.442695
    %v1318 = vpow.pop %v1317
    %v1319 = vadd.f32 %v1318, 1.0
    %v1320 = vrcp.pop %v1319
    %v1321 = vmul.f32 1.0, %v1320
    %v1322 = vtanh.pop %v1311
    %v1323 = vmul.f32 %v1321, %v1184
    %1325 = vrot.lane.b32.xlu0 %v1322, 32
    %v1326 = vpop.permute.xlu0 %1325
    %v1328 = vmul.f32 %v1321, %v1326
    %1330 = vrot.lane.b32.xlu0 %v1328, 32
    %v1331 = vpop.permute.xlu0 %1330
    %v1333 = vadd.f32 %v1323, %v1331
    %v1334 = vtanh.pop %v1333
    %1336 = vrot.lane.b32.xlu0 %v1334, 32
    %v1337 = vpop.permute.xlu0 %1336
    %v1339 = vmul.f32 %v1321, %v1337
    %v1340 = vpack.c.bf16 %v1339, %v1339
    %1342 = vrot.lane.b32.xlu0 %v1340, 64
    %v1343 = vpop.permute.xlu0 %1342
    %v1345 = vsel %vm154, %v1343, 0
    %1347 = vmatprep.subr.bf16.mxu0 0
    %1348 = vmatpush1.bf16.msra.mxu0 %v86
    %1349 = vmatprep.subr.bf16.mxu0 0
    %1350 = vmatpush1.bf16.msra.mxu0 %v87
    %1351 = vmatprep.subr.bf16.mxu0 0
    %1352 = vmatpush1.bf16.msra.mxu0 0
    %1353 = vmatprep.subr.bf16.mxu0 0
    %1354 = vmatpush1.bf16.msra.mxu0 0
    %1355 = vmatprep.subr.bf16.mxu0 0
    %1356 = vmatpush1.bf16.msra.mxu0 0
    %1357 = vmatprep.subr.bf16.mxu0 0
    %1358 = vmatpush1.bf16.msra.mxu0 0
    %1359 = vmatprep.subr.bf16.mxu0 0
    %1360 = vmatpush1.bf16.msra.mxu0 0
    %1361 = vmatprep.subr.bf16.mxu0 0
    %1362 = vmatpush1.bf16.msra.mxu0 0
    %1363 = vmatprep.subr.bf16.mxu0 0
    %1364 = vmatpush1.bf16.msra.mxu0 0
    %1365 = vmatprep.subr.bf16.mxu0 0
    %1366 = vmatpush1.bf16.msra.mxu0 0
    %1367 = vmatprep.subr.bf16.mxu0 0
    %1368 = vmatpush1.bf16.msra.mxu0 0
    %1369 = vmatprep.subr.bf16.mxu0 0
    %1370 = vmatpush1.bf16.msra.mxu0 0
    %1371 = vmatprep.subr.bf16.mxu0 0
    %1372 = vmatpush1.bf16.msra.mxu0 0
    %1373 = vmatprep.subr.bf16.mxu0 0
    %1374 = vmatpush1.bf16.msra.mxu0 0
    %1375 = vmatprep.subr.bf16.mxu0 0
    %1376 = vmatpush1.bf16.msra.mxu0 0
    %1377 = vmatprep.subr.bf16.mxu0 0
    %1378 = vmatpush1.bf16.msra.mxu0 0
    %1379 = vmatprep.mubr.bf16.mxu0 0
    %1380 = vmatmul.mubr.bf16.gmra.mrb[0].mxu0 %v1345
    %v1381 = vpop.f32.mrb[0].mxu0
    %v1382 = vadd.f32 %v88, %v1381
    %v1383 = vpop.f32.mrb[0].mxu0
    %v1384 = vpop.f32.mrb[0].mxu0
    %v1385 = vpop.f32.mrb[0].mxu0
    %1386 = vdwg.mxu0
    %vm1387 = vcmask 41984
    %1388 = vst.msk [vmem:[#allocation5] sm:$0x3] %vm1387, %v1382
    // Predicated region
    $region14: #{forward.1} parent=1 // pred_check
      _
    $region15: #{forward.1} parent=1 // pred_check_branch
      %1390 = sbr.rel (0) target = $region17
    $region16: #{forward.1} parent=1 // pred_region
      %s1392 = ssub.s32 32, 32
      %1393 = vsyncadd [#allocation4], %s1392
      %s1395 = sshll.u32 [#allocation5], 4
      %s1396 = int_to_ptr.vmem [resolvable:$true] %s1395
      %1398 = dma.vmem_to_hbm [thread:$0]  %s1396, 32, %s2, [#allocation4]
    $region17: #{forward.1} parent=1 // pred_fallthru
      _
    // Predicated region
    $region18: #{forward.1} parent=1 // pred_check
      _
    $region19: #{forward.1} parent=1 // pred_check_branch
      %1400 = sbr.rel (0) target = $region21
    $region20: #{forward.1} parent=1 // pred_region
      %1401 = dma.done [#allocation4], 32
    $region21: #{forward.1} parent=1 // pred_fallthru
      _
    %1402 = vsyncpa [#allocation3], 1
    %1403 = vsyncpa [#allocation4], 1

</llo_original>
